<compile_context>
chip_gen: v7x
topology: tpu7x:2x2x1
jax: 0.10.0
libtpu: 0.0.40
codegen_flags: <defaults>
</compile_context>

<pallas_src>
import functools

import jax
import jax.numpy as jnp
from jax.experimental import pallas as pl
from jax.experimental.pallas import tpu as pltpu


def _round_up(a, b):
    return (a + b - 1) // b * b


def _cdiv(a, b):
    return (a + b - 1) // b


# ----------------------------------------------------------------------------
# Kernels (transposed layout: rows N on the lane axis)
# ----------------------------------------------------------------------------
def _nerf_kernel_nof(x_ref, w0_ref, w1_ref, w2_ref, wo_ref, bo_ref, v_ref):
    # x_ref: [input_ch, tn]; weights in PyTorch [out, in] layout; v_ref: [3, tn].
    h = jnp.dot(w0_ref[...], x_ref[...], preferred_element_type=jnp.float32)
    h = jnp.maximum(h, 0.0)
    h = jnp.dot(w1_ref[...], h, preferred_element_type=jnp.float32)
    h = jnp.maximum(h, 0.0)
    h = jnp.dot(w2_ref[...], h, preferred_element_type=jnp.float32)
    h = jnp.maximum(h, 0.0)
    v = jnp.dot(wo_ref[...], h, preferred_element_type=jnp.float32) + bo_ref[...]
    v_ref[...] = v.astype(v_ref.dtype)


def _nerf_kernel_f(x_ref, w0_ref, w1_ref, w2_ref, wcat_ref, bcat_ref,
                   wf2_ref, bf2_ref, v_ref, f_ref, *, hidden):
    # wcat = [W_f ; W_out]  -> [hidden+3, hidden],  bcat = [b_f ; b_out] -> [hidden+3, 1].
    h = jnp.dot(w0_ref[...], x_ref[...], preferred_element_type=jnp.float32)
    h = jnp.maximum(h, 0.0)
    h = jnp.dot(w1_ref[...], h, preferred_element_type=jnp.float32)
    h = jnp.maximum(h, 0.0)
    h = jnp.dot(w2_ref[...], h, preferred_element_type=jnp.float32)
    h = jnp.maximum(h, 0.0)
    # One fused MXU pass producing both the f-branch pre-activation and v.
    cat = jnp.dot(wcat_ref[...], h, preferred_element_type=jnp.float32) + bcat_ref[...]
    f_pre = cat[:hidden, :]            # rows 0..hidden-1: sublane-tile aligned (8 | 64)
    v = cat[hidden:hidden + 3, :]      # rows hidden..hidden+2 (start of the last tile)
    f = jnp.maximum(f_pre, 0.0)
    f = jnp.dot(wf2_ref[...], f, preferred_element_type=jnp.float32) + bf2_ref[...]
    # Direct lane-dense stores; no concatenate / relayout on the output path.
    v_ref[...] = v.astype(v_ref.dtype)
    f_ref[...] = f.astype(f_ref.dtype)


# ----------------------------------------------------------------------------
# Wrapper
# ----------------------------------------------------------------------------
def nerf_small_potential_forward(x, params, *, use_f=False, tn=4096):
    """x: [N, input_ch] float32.  Weights are PyTorch-layout [out, in],
    biases [out, 1].  Returns (v, f), each [N, 3]."""
    N, input_ch = x.shape
    hidden = params["w1"].shape[0]
    out_dtype = x.dtype

    # Lane tile over rows: large to amortize ~0.35us/step pipeline overhead,
    # multiple of 128 (lane-dense), capped so the "parallel" grid keeps >= 2
    # steps whenever possible (v7x has 2 TensorCores).
    n128 = _round_up(N, 128)
    cap = max(128, _round_up(_cdiv(N, 2), 128))
    tn_eff = max(128, min(_round_up(int(tn), 128), cap, n128))
    npad = _round_up(N, tn_eff)
    grid = (npad // tn_eff,)

    # Rows onto lanes: x^T is [input_ch, npad]; zero-padded tail columns are
    # sliced away from the outputs below.
    xt = x.T
    if npad != N:
        xt = jnp.pad(xt, ((0, 0), (0, npad - N)))

    def full_spec(shape):
        return pl.BlockSpec(shape, lambda i, _n=len(shape): (0,) * _n)

    col_in = pl.BlockSpec((input_ch, tn_eff), lambda i: (0, i))
    col_out = pl.BlockSpec((3, tn_eff), lambda i: (0, i))

    if use_f:
        w_cat = jnp.concatenate([params["w_f"], params["w_out"]], axis=0)   # [h+3, h]
        b_cat = jnp.concatenate([params["b_f"], params["b_out"]], axis=0)   # [h+3, 1]
        kernel = functools.partial(_nerf_kernel_f, hidden=hidden)
        in_specs = [
            col_in,
            full_spec((hidden, input_ch)),
            full_spec((hidden, hidden)),
            full_spec((hidden, hidden)),
            full_spec((hidden + 3, hidden)),
            full_spec((hidden + 3, 1)),
            full_spec((3, hidden)),
            full_spec((3, 1)),
        ]
        args = (xt, params["w0"], params["w1"], params["w2"],
                w_cat, b_cat, params["w_f2"], params["b_f2"])
        out_shape = (jax.ShapeDtypeStruct((3, npad), out_dtype),
                     jax.ShapeDtypeStruct((3, npad), out_dtype))
        out_specs = [col_out, col_out]
        out_bytes = 2 * 3 * npad * jnp.dtype(out_dtype).itemsize
        flops = 2 * npad * (input_ch * hidden + 2 * hidden * hidden
                            + hidden * (hidden + 3) + hidden * 3)
    else:
        kernel = _nerf_kernel_nof
        in_specs = [
            col_in,
            full_spec((hidden, input_ch)),
            full_spec((hidden, hidden)),
            full_spec((hidden, hidden)),
            full_spec((3, hidden)),
            full_spec((3, 1)),
        ]
        args = (xt, params["w0"], params["w1"], params["w2"],
                params["w_out"], params["b_out"])
        out_shape = jax.ShapeDtypeStruct((3, npad), out_dtype)
        out_specs = col_out
        out_bytes = 3 * npad * jnp.dtype(out_dtype).itemsize
        flops = 2 * npad * (input_ch * hidden + 2 * hidden * hidden + hidden * 3)

    bytes_accessed = sum(int(a.size) * a.dtype.itemsize for a in args) + out_bytes
    cost = pl.CostEstimate(flops=int(flops), transcendentals=0,
                           bytes_accessed=int(bytes_accessed))

    out = pl.pallas_call(
        kernel,
        out_shape=out_shape,
        grid_spec=pltpu.PrefetchScalarGridSpec(
            num_scalar_prefetch=0,
            grid=grid,
            in_specs=in_specs,
            out_specs=out_specs,
        ),
        compiler_params=pltpu.CompilerParams(
            dimension_semantics=("parallel",)),
        cost_estimate=cost,
    )(*args)

    if use_f:
        v = out[0][:, :N].T
        f = out[1][:, :N].T
    else:
        v = out[:, :N].T
        f = v * 0.0   # module semantics: f = v * 0 (no kernel work, no HBM writeback)
    return v, f


# ----------------------------------------------------------------------------
# Reference + params (PyTorch layout: W [out, in], b [out, 1])
# ----------------------------------------------------------------------------
def init_params(key, *, input_ch=3, hidden_dim=64, use_f=False,
                dtype=jnp.float32):
    ks = jax.random.split(key, 10)
    scale = 0.1
    params = {
        "w0": scale * jax.random.normal(ks[0], (hidden_dim, input_ch), dtype),
        "w1": scale * jax.random.normal(ks[1], (hidden_dim, hidden_dim), dtype),
        "w2": scale * jax.random.normal(ks[2], (hidden_dim, hidden_dim), dtype),
        "w_out": scale * jax.random.normal(ks[3], (3, hidden_dim), dtype),
        "b_out": scale * jax.random.normal(ks[4], (3, 1), dtype),
    }
    if use_f:
        params.update({
            "w_f": scale * jax.random.normal(ks[5], (hidden_dim, hidden_dim), dtype),
            "b_f": scale * jax.random.normal(ks[6], (hidden_dim, 1), dtype),
            "w_f2": scale * jax.random.normal(ks[7], (3, hidden_dim), dtype),
            "b_f2": scale * jax.random.normal(ks[8], (3, 1), dtype),
        })
    return params


def reference_forward(x, params, *, use_f=False):
    h = x
    for w in (params["w0"], params["w1"], params["w2"]):
        h = jnp.maximum(h @ w.T, 0.0)
    v = h @ params["w_out"].T + params["b_out"][:, 0]
    if use_f:
        f = jnp.maximum(h @ params["w_f"].T + params["b_f"][:, 0], 0.0)
        f = f @ params["w_f2"].T + params["b_f2"][:, 0]
    else:
        f = v * 0
    return v, f


if __name__ == "__main__":
    key = jax.random.PRNGKey(0)
    kx, kp = jax.random.split(key)

    input_ch, hidden_dim = 3, 64
    ok = True
    # N=2048 -> tn_eff=1024, 2 parallel grid steps (both v7x TCs busy);
    # N=200 exercises the padding / minimum-tile path (tn_eff=128, 2 steps).
    for N in (2048, 200):
        x = jax.random.normal(jax.random.fold_in(kx, N), (N, input_ch),
                              jnp.float32)
        for use_f in (False, True):
            params = init_params(kp, input_ch=input_ch, hidden_dim=hidden_dim,
                                 use_f=use_f)
            v, f = nerf_small_potential_forward(x, params, use_f=use_f,
                                                tn=4096)
            jax.block_until_ready((v, f))
            v_ref, f_ref = reference_forward(x, params, use_f=use_f)
            ok &= bool(jnp.allclose(v, v_ref, atol=1e-4, rtol=1e-4))
            ok &= bool(jnp.allclose(f, f_ref, atol=1e-4, rtol=1e-4))

    print("KERNEL_OK" if ok else "KERNEL_MISMATCH")
</pallas_src>

<mosaic_0001>
module attributes {stable_mosaic.version = 11 : i64} {
  func.func @_nerf_kernel_nof(%arg0: i32, %arg1: memref<3x1024xf32, #tpu.memory_space<vmem>>, %arg2: memref<64x3xf32, #tpu.memory_space<vmem>>, %arg3: memref<64x64xf32, #tpu.memory_space<vmem>>, %arg4: memref<64x64xf32, #tpu.memory_space<vmem>>, %arg5: memref<3x64xf32, #tpu.memory_space<vmem>>, %arg6: memref<3x1xf32, #tpu.memory_space<vmem>>, %arg7: memref<3x1024xf32, #tpu.memory_space<vmem>>) attributes {dimension_semantics = [#tpu.dimension_semantics<parallel>], iteration_bounds = array<i64: 2>, scalar_prefetch = 0 : i64, scratch_operands = 0 : i64, tpu.core_type = #tpu.core_type<tc>, window_params = [{transform_indices = @transform_0, window_bounds = array<i64: 3, 1024>}, {pipeline_mode = #tpu.pipeline_mode<synchronous>, transform_indices = @transform_1, window_bounds = array<i64: 64, 3>}, {pipeline_mode = #tpu.pipeline_mode<synchronous>, transform_indices = @transform_2, window_bounds = array<i64: 64, 64>}, {pipeline_mode = #tpu.pipeline_mode<synchronous>, transform_indices = @transform_3, window_bounds = array<i64: 64, 64>}, {pipeline_mode = #tpu.pipeline_mode<synchronous>, transform_indices = @transform_4, window_bounds = array<i64: 3, 64>}, {pipeline_mode = #tpu.pipeline_mode<synchronous>, transform_indices = @transform_5, window_bounds = array<i64: 3, 1>}, {transform_indices = @transform_6, window_bounds = array<i64: 3, 1024>}]} {
    %c0 = arith.constant 0 : index
    %c0_0 = arith.constant 0 : index
    %0 = vector.load %arg2[%c0, %c0_0] : memref<64x3xf32, #tpu.memory_space<vmem>>, vector<64x3xf32>
    %c0_1 = arith.constant 0 : index
    %c0_2 = arith.constant 0 : index
    %1 = vector.load %arg1[%c0_1, %c0_2] : memref<3x1024xf32, #tpu.memory_space<vmem>>, vector<3x1024xf32>
    %cst = arith.constant dense<0.000000e+00> : vector<64x1024xf32>
    %2 = tpu.matmul %0, %1, %cst {dimension_numbers = #tpu.dot_dimension_numbers<[1], [0], [0], [1], [0, 0, 1, 1], [], []>} : vector<64x3xf32>, vector<3x1024xf32>, vector<64x1024xf32> -> vector<64x1024xf32>
    %cst_3 = arith.constant 0.000000e+00 : f32
    %3 = vector.broadcast %cst_3 : f32 to vector<64x1024xf32>
    %4 = arith.maximumf %2, %3 : vector<64x1024xf32>
    %c0_4 = arith.constant 0 : index
    %c0_5 = arith.constant 0 : index
    %5 = vector.load %arg3[%c0_4, %c0_5] : memref<64x64xf32, #tpu.memory_space<vmem>>, vector<64x64xf32>
    %cst_6 = arith.constant dense<0.000000e+00> : vector<64x1024xf32>
    %6 = tpu.matmul %5, %4, %cst_6 {dimension_numbers = #tpu.dot_dimension_numbers<[1], [0], [0], [1], [0, 0, 1, 1], [], []>} : vector<64x64xf32>, vector<64x1024xf32>, vector<64x1024xf32> -> vector<64x1024xf32>
    %cst_7 = arith.constant 0.000000e+00 : f32
    %7 = vector.broadcast %cst_7 : f32 to vector<64x1024xf32>
    %8 = arith.maximumf %6, %7 : vector<64x1024xf32>
    %c0_8 = arith.constant 0 : index
    %c0_9 = arith.constant 0 : index
    %9 = vector.load %arg4[%c0_8, %c0_9] : memref<64x64xf32, #tpu.memory_space<vmem>>, vector<64x64xf32>
    %cst_10 = arith.constant dense<0.000000e+00> : vector<64x1024xf32>
    %10 = tpu.matmul %9, %8, %cst_10 {dimension_numbers = #tpu.dot_dimension_numbers<[1], [0], [0], [1], [0, 0, 1, 1], [], []>} : vector<64x64xf32>, vector<64x1024xf32>, vector<64x1024xf32> -> vector<64x1024xf32>
    %cst_11 = arith.constant 0.000000e+00 : f32
    %11 = vector.broadcast %cst_11 : f32 to vector<64x1024xf32>
    %12 = arith.maximumf %10, %11 : vector<64x1024xf32>
    %c0_12 = arith.constant 0 : index
    %c0_13 = arith.constant 0 : index
    %13 = vector.load %arg5[%c0_12, %c0_13] : memref<3x64xf32, #tpu.memory_space<vmem>>, vector<3x64xf32>
    %cst_14 = arith.constant dense<0.000000e+00> : vector<3x1024xf32>
    %14 = tpu.matmul %13, %12, %cst_14 {dimension_numbers = #tpu.dot_dimension_numbers<[1], [0], [0], [1], [0, 0, 1, 1], [], []>} : vector<3x64xf32>, vector<64x1024xf32>, vector<3x1024xf32> -> vector<3x1024xf32>
    %c0_15 = arith.constant 0 : index
    %c0_16 = arith.constant 0 : index
    %15 = vector.load %arg6[%c0_15, %c0_16] : memref<3x1xf32, #tpu.memory_space<vmem>>, vector<3x1xf32>
    %16 = vector.broadcast %15 : vector<3x1xf32> to vector<3x1024xf32>
    %17 = arith.addf %14, %16 : vector<3x1024xf32>
    %c0_17 = arith.constant 0 : index
    %c0_18 = arith.constant 0 : index
    %18 = vector.load %arg7[%c0_17, %c0_18] : memref<3x1024xf32, #tpu.memory_space<vmem>>, vector<3x1024xf32>
    tpu.vector_store %arg7[%c0_17, %c0_18], %17 {strides = array<i32>} : memref<3x1024xf32, #tpu.memory_space<vmem>>, vector<3x1024xf32>,
    return
  }
  func.func @transform_0(%arg0: i32) -> (i32, i32) {
    %c0_i32 = arith.constant 0 : i32
    %c0_i32_0 = arith.constant 0 : i32
    return %c0_i32, %arg0 : i32, i32
  }
  func.func @transform_1(%arg0: i32) -> (i32, i32) {
    %c0_i32 = arith.constant 0 : i32
    %c0_i32_0 = arith.constant 0 : i32
    %c0_i32_1 = arith.constant 0 : i32
    return %c0_i32, %c0_i32_0 : i32, i32
  }
  func.func @transform_2(%arg0: i32) -> (i32, i32) {
    %c0_i32 = arith.constant 0 : i32
    %c0_i32_0 = arith.constant 0 : i32
    %c0_i32_1 = arith.constant 0 : i32
    return %c0_i32, %c0_i32_0 : i32, i32
  }
  func.func @transform_3(%arg0: i32) -> (i32, i32) {
    %c0_i32 = arith.constant 0 : i32
    %c0_i32_0 = arith.constant 0 : i32
    %c0_i32_1 = arith.constant 0 : i32
    return %c0_i32, %c0_i32_0 : i32, i32
  }
  func.func @transform_4(%arg0: i32) -> (i32, i32) {
    %c0_i32 = arith.constant 0 : i32
    %c0_i32_0 = arith.constant 0 : i32
    %c0_i32_1 = arith.constant 0 : i32
    return %c0_i32, %c0_i32_0 : i32, i32
  }
  func.func @transform_5(%arg0: i32) -> (i32, i32) {
    %c0_i32 = arith.constant 0 : i32
    %c0_i32_0 = arith.constant 0 : i32
    %c0_i32_1 = arith.constant 0 : i32
    return %c0_i32, %c0_i32_0 : i32, i32
  }
  func.func @transform_6(%arg0: i32) -> (i32, i32) {
    %c0_i32 = arith.constant 0 : i32
    %c0_i32_0 = arith.constant 0 : i32
    return %c0_i32, %arg0 : i32, i32
  }
}

</mosaic_0001>

<llo_original>
// kernel: tpu_custom_call.1
$region0: #{tpu_custom_call.1}
  #allocation0 [shape = 'u32[]', space=smem, size = 0x4, offset = 0x4, fixed_abs, tag = 'smem constant byte address 0x4 - core index']
  #allocation1 [shape = 'u32[144,128]{1,0:T(1,128)}', space=vmem, size = 0x12000, scoped, tag = 'internal scratch']
  %s0 = inlined_call_operand.vmem [shape: f32[3,2048], index: 0, kind: input, shape index: {}]
  %s1 = inlined_call_operand.vmem [shape: f32[64,3], index: 1, kind: input, shape index: {}]
  %s2 = inlined_call_operand.hbm [shape: f32[64,64], index: 2, kind: input, shape index: {}]
  %s3 = inlined_call_operand.hbm [shape: f32[64,64], index: 3, kind: input, shape index: {}]
  %s4 = inlined_call_operand.vmem [shape: f32[3,64], index: 4, kind: input, shape index: {}]
  %s5 = inlined_call_operand.vmem [shape: f32[3,1], index: 5, kind: input, shape index: {}]
  %s6 = inlined_call_operand.hbm [shape: f32[3,2048], index: 6, kind: output, shape index: {}]
  %s7 = sld [smem:[#allocation0]]
  $region65: #{tpu_custom_call.1} parent=0
    _
  %s9 = ssub.s32 1, %s7
  %s10 = scalar_select 0, %s9, %s7
  $region1: #{tpu_custom_call.1} parent=0
    #allocation2 [shape = 'u8[32768]{0}', space=vmem, size = 0x8000, scoped, tag = 'input window, operand 2, single buffered']
    #allocation3 [shape = 's32[2]{0}', space=sflag, size = 0x8, scoped, tag = 'scoped memory for tpu_custom_call.1']
    #allocation4 [shape = 's32[2]{0}', space=sflag, size = 0x8, scoped, tag = 'scoped memory for tpu_custom_call.1']
    #allocation5 [shape = 'u8[32768]{0}', space=vmem, size = 0x8000, scoped, tag = 'input window, operand 3, single buffered']
    #allocation6 [shape = 's32[1]{0}', space=sflag, size = 0x4, scoped, tag = 'scoped memory for tpu_custom_call.1']
    #allocation7 [shape = 'u8[32768]{0}', space=vmem, size = 0x8000, scoped, tag = 'output window, operand 0']
    %11 = vsyncpa [#allocation3], 0
    %12 = vsyncpa [#allocation6], 0
    %13 = vsyncpa [#allocation4], 0
    %s14 = scalar_lea.sflag [#allocation4], 1
    %15 = vsyncpa %s14, 0
    loop: start=0, step=1, limit=4
    $region2: #{tpu_custom_call.1} parent=1 // loop_pre_header
      _
    $region3: #{tpu_custom_call.1} parent=1 // loop_header
      %s17 = sphi 0, %s21
      %p18 = scmp.ge.s32.totalorder %s17, 4
      %s27 = sphi 0, %s29
      %s30 = sphi 0, %s27
      %s31 = sphi 0, %s30
      %s47 = sphi 0, %s31
      %s51 = sphi 0, %s51
      %s53 = sphi 0, %s51
      %s54 = sphi 0, %s53
      %s68 = sphi 0, %s54
      %s72 = sphi 0, %s72
      %s74 = sphi 0, %s72
      %s75 = sphi 0, %s74
      %s89 = sphi 0, %s75
      %s93 = sphi 0, %s93
      %s95 = sphi 0, %s93
      %s96 = sphi 0, %s95
      %s110 = sphi 0, %s96
      %s114 = sphi 0, %s114
      %s116 = sphi 0, %s114
      %s117 = sphi 0, %s116
      %s131 = sphi 0, %s117
      %s135 = sphi 0, %s135
      %s137 = sphi 0, %s135
      %s138 = sphi 0, %s137
      %s152 = sphi 0, %s138
      %s158 = sphi 0, %s160
      %s161 = sphi 0, %s158
      %s162 = sphi 0, %s161
      %s178 = sphi 0, %s162
    $region4: #{tpu_custom_call.1} parent=1 // loop_header_branch
      %20 = sbr.rel (%p18) target = $region8
    $region5: #{tpu_custom_call.1} parent=1 // loop_body
      %s22 = ssub.s32 %s17, 1
      %s23 = ssub.s32 %s17, 2
      %s24 = sadd.s32 %s17, 1
      %s25 = ssub.s32 %s17, %s24
      %p26 = scmp.eq.s32.totalorder %s25, 0
      %s28 = sadd.s32 %s27, 1
      %s29 = scalar_select %p26, %s27, %s28
      %p32 = pneg %p26
      %p33 = scmp.eq.s32.totalorder %s17, 1
      %p34 = por %p32, %p33
      %p35 = scmp.ne.s32.totalorder %s27, %s30
      %p36 = scmp.eq.s32.totalorder %s17, 0
      %p37 = por %p35, %p36
      %p38 = scmp.ne.s32.totalorder %s27, %s30
      %p39 = scmp.eq.s32.totalorder %s22, 1
      %p40 = por %p38, %p39
      %p41 = scmp.ne.s32.totalorder %s30, %s31
      %p42 = scmp.eq.s32.totalorder %s22, 0
      %p43 = por %p41, %p42
      %p44 = scmp.ne.s32.totalorder %s30, %s31
      %p45 = scmp.eq.s32.totalorder %s23, 1
      %p46 = por %p44, %p45
      %p48 = scmp.ne.s32.totalorder %s31, %s47
      %p49 = scmp.eq.s32.totalorder %s23, 0
      %p50 = por %p48, %p49
      %s52 = sadd.s32 %s51, 1
      %p55 = scmp.eq.s32.totalorder %s17, 1
      %p56 = scmp.ne.s32.totalorder %s51, %s53
      %p57 = scmp.eq.s32.totalorder %s17, 0
      %p58 = por %p56, %p57
      %p59 = scmp.ne.s32.totalorder %s51, %s53
      %p60 = scmp.eq.s32.totalorder %s22, 1
      %p61 = por %p59, %p60
      %p62 = scmp.ne.s32.totalorder %s53, %s54
      %p63 = scmp.eq.s32.totalorder %s22, 0
      %p64 = por %p62, %p63
      %p65 = scmp.ne.s32.totalorder %s53, %s54
      %p66 = scmp.eq.s32.totalorder %s23, 1
      %p67 = por %p65, %p66
      %p69 = scmp.ne.s32.totalorder %s54, %s68
      %p70 = scmp.eq.s32.totalorder %s23, 0
      %p71 = por %p69, %p70
      %s73 = sadd.s32 %s72, 1
      %p76 = scmp.eq.s32.totalorder %s17, 1
      %p77 = scmp.ne.s32.totalorder %s72, %s74
      %p78 = scmp.eq.s32.totalorder %s17, 0
      %p79 = por %p77, %p78
      %p80 = scmp.ne.s32.totalorder %s72, %s74
      %p81 = scmp.eq.s32.totalorder %s22, 1
      %p82 = por %p80, %p81
      %p83 = scmp.ne.s32.totalorder %s74, %s75
      %p84 = scmp.eq.s32.totalorder %s22, 0
      %p85 = por %p83, %p84
      %p86 = scmp.ne.s32.totalorder %s74, %s75
      %p87 = scmp.eq.s32.totalorder %s23, 1
      %p88 = por %p86, %p87
      %p90 = scmp.ne.s32.totalorder %s75, %s89
      %p91 = scmp.eq.s32.totalorder %s23, 0
      %p92 = por %p90, %p91
      %s94 = sadd.s32 %s93, 1
      %p97 = scmp.eq.s32.totalorder %s17, 1
      %p98 = scmp.ne.s32.totalorder %s93, %s95
      %p99 = scmp.eq.s32.totalorder %s17, 0
      %p100 = por %p98, %p99
      %p101 = scmp.ne.s32.totalorder %s93, %s95
      %p102 = scmp.eq.s32.totalorder %s22, 1
      %p103 = por %p101, %p102
      %p104 = scmp.ne.s32.totalorder %s95, %s96
      %p105 = scmp.eq.s32.totalorder %s22, 0
      %p106 = por %p104, %p105
      %p107 = scmp.ne.s32.totalorder %s95, %s96
      %p108 = scmp.eq.s32.totalorder %s23, 1
      %p109 = por %p107, %p108
      %p111 = scmp.ne.s32.totalorder %s96, %s110
      %p112 = scmp.eq.s32.totalorder %s23, 0
      %p113 = por %p111, %p112
      %s115 = sadd.s32 %s114, 1
      %p118 = scmp.eq.s32.totalorder %s17, 1
      %p119 = scmp.ne.s32.totalorder %s114, %s116
      %p120 = scmp.eq.s32.totalorder %s17, 0
      %p121 = por %p119, %p120
      %p122 = scmp.ne.s32.totalorder %s114, %s116
      %p123 = scmp.eq.s32.totalorder %s22, 1
      %p124 = por %p122, %p123
      %p125 = scmp.ne.s32.totalorder %s116, %s117
      %p126 = scmp.eq.s32.totalorder %s22, 0
      %p127 = por %p125, %p126
      %p128 = scmp.ne.s32.totalorder %s116, %s117
      %p129 = scmp.eq.s32.totalorder %s23, 1
      %p130 = por %p128, %p129
      %p132 = scmp.ne.s32.totalorder %s117, %s131
      %p133 = scmp.eq.s32.totalorder %s23, 0
      %p134 = por %p132, %p133
      %s136 = sadd.s32 %s135, 1
      %p139 = scmp.eq.s32.totalorder %s17, 1
      %p140 = scmp.ne.s32.totalorder %s135, %s137
      %p141 = scmp.eq.s32.totalorder %s17, 0
      %p142 = por %p140, %p141
      %p143 = scmp.ne.s32.totalorder %s135, %s137
      %p144 = scmp.eq.s32.totalorder %s22, 1
      %p145 = por %p143, %p144
      %p146 = scmp.ne.s32.totalorder %s137, %s138
      %p147 = scmp.eq.s32.totalorder %s22, 0
      %p148 = por %p146, %p147
      %p149 = scmp.ne.s32.totalorder %s137, %s138
      %p150 = scmp.eq.s32.totalorder %s23, 1
      %p151 = por %p149, %p150
      %p153 = scmp.ne.s32.totalorder %s138, %s152
      %p154 = scmp.eq.s32.totalorder %s23, 0
      %p155 = por %p153, %p154
      %s156 = ssub.s32 %s17, %s24
      %p157 = scmp.eq.s32.totalorder %s156, 0
      %s159 = sadd.s32 %s158, 1
      %s160 = scalar_select %p157, %s158, %s159
      %p163 = pneg %p157
      %p164 = scmp.eq.s32.totalorder %s17, 1
      %p165 = por %p163, %p164
      %p166 = scmp.ne.s32.totalorder %s158, %s161
      %p167 = scmp.eq.s32.totalorder %s17, 0
      %p168 = por %p166, %p167
      %p169 = scmp.ne.s32.totalorder %s158, %s161
      %p170 = scmp.eq.s32.totalorder %s22, 1
      %p171 = por %p169, %p170
      %p172 = scmp.ne.s32.totalorder %s161, %s162
      %p173 = scmp.eq.s32.totalorder %s22, 0
      %p174 = por %p172, %p173
      %p175 = scmp.ne.s32.totalorder %s161, %s162
      %p176 = scmp.eq.s32.totalorder %s23, 1
      %p177 = por %p175, %p176
      %p179 = scmp.ne.s32.totalorder %s162, %s178
      %p180 = scmp.eq.s32.totalorder %s23, 0
      %p181 = por %p179, %p180
      %p182 = scmp.le.s32.totalorder 1, %s17
      %p183 = scmp.lt.s32.totalorder %s17, 3
      %p184 = pnand %p182, %p183
      %p185 = pneg %p184
      // Predicated region
      $region9: #{tpu_custom_call.1} parent=5 // pred_check
        _
      $region10: #{tpu_custom_call.1} parent=5 // pred_check_branch
        %187 = sbr.rel (%p184) target = $region12
      $region11: #{tpu_custom_call.1} parent=5 // pred_region
        %s188 = ssub.s32 %s17, 1
        // Predicated region
        $region13: #{tpu_custom_call.1} parent=11 // pred_check
          %p189 = pneg %p64
        $region14: #{tpu_custom_call.1} parent=11 // pred_check_branch
          %191 = sbr.rel (%p189) target = $region16
        $region15: #{tpu_custom_call.1} parent=11 // pred_region
          _
        $region16: #{tpu_custom_call.1} parent=11 // pred_fallthru
          _
        // Predicated region
        $region17: #{tpu_custom_call.1} parent=11 // pred_check
          %p192 = pneg %p85
        $region18: #{tpu_custom_call.1} parent=11 // pred_check_branch
          %194 = sbr.rel (%p192) target = $region20
        $region19: #{tpu_custom_call.1} parent=11 // pred_region
          %s196 = ssub.s32 1024, 1024
          %197 = vsyncadd [#allocation3], %s196
          %s198 = sshll.u32 [#allocation2], 4
          %s199 = int_to_ptr.vmem [resolvable:$true] %s198
          %204 = dma.hbm_to_vmem [thread:$0]  %s2, 1024, %s199, [#allocation3], 128, 128, 8
        $region20: #{tpu_custom_call.1} parent=11 // pred_fallthru
          _
        // Predicated region
        $region21: #{tpu_custom_call.1} parent=11 // pred_check
          %p205 = pneg %p106
        $region22: #{tpu_custom_call.1} parent=11 // pred_check_branch
          %207 = sbr.rel (%p205) target = $region24
        $region23: #{tpu_custom_call.1} parent=11 // pred_region
          %s209 = ssub.s32 1024, 1024
          %210 = vsyncadd [#allocation6], %s209
          %s211 = sshll.u32 [#allocation5], 4
          %s212 = int_to_ptr.vmem [resolvable:$true] %s211
          %217 = dma.hbm_to_vmem [thread:$0]  %s3, 1024, %s212, [#allocation6], 128, 128, 8
        $region24: #{tpu_custom_call.1} parent=11 // pred_fallthru
          _
        // Predicated region
        $region25: #{tpu_custom_call.1} parent=11 // pred_check
          %p218 = pneg %p127
        $region26: #{tpu_custom_call.1} parent=11 // pred_check_branch
          %220 = sbr.rel (%p218) target = $region28
        $region27: #{tpu_custom_call.1} parent=11 // pred_region
          _
        $region28: #{tpu_custom_call.1} parent=11 // pred_fallthru
          _
        // Predicated region
        $region29: #{tpu_custom_call.1} parent=11 // pred_check
          %p221 = pneg %p148
        $region30: #{tpu_custom_call.1} parent=11 // pred_check_branch
          %223 = sbr.rel (%p221) target = $region32
        $region31: #{tpu_custom_call.1} parent=11 // pred_region
          _
        $region32: #{tpu_custom_call.1} parent=11 // pred_fallthru
          _
      $region12: #{tpu_custom_call.1} parent=5 // pred_fallthru
        _
      %p224 = scmp.lt.s32.totalorder %s17, 2
      // Predicated region
      $region33: #{tpu_custom_call.1} parent=5 // pred_check
        %p225 = pneg %p224
      $region34: #{tpu_custom_call.1} parent=5 // pred_check_branch
        %227 = sbr.rel (%p225) target = $region36
      $region35: #{tpu_custom_call.1} parent=5 // pred_region
        // Predicated region
        $region37: #{tpu_custom_call.1} parent=35 // pred_check
          %p228 = pneg %p37
        $region38: #{tpu_custom_call.1} parent=35 // pred_check_branch
          %230 = sbr.rel (%p228) target = $region40
        $region39: #{tpu_custom_call.1} parent=35 // pred_region
          %s231 = smul.u32 8, %s17
          %p232 = scmp.lt.s32.totalorder %s231, 15
          %s233 = scalar_select %p232, %s231, 15
          %s234 = smul.addr %s233, 4
          %s235 = scalar_lea.vmem %s0, %s234
          %s236 = smul.u32 8, %s17
        $region40: #{tpu_custom_call.1} parent=35 // pred_fallthru
          _
      $region36: #{tpu_custom_call.1} parent=5 // pred_fallthru
        _
      %p237 = scmp.le.s32.totalorder 1, %s17
      %p238 = scmp.lt.s32.totalorder %s17, 3
      %p239 = pnand %p237, %p238
      %p240 = pneg %p239
      // Predicated region
      $region41: #{tpu_custom_call.1} parent=5 // pred_check
        _
      $region42: #{tpu_custom_call.1} parent=5 // pred_check_branch
        %242 = sbr.rel (%p239) target = $region44
      $region43: #{tpu_custom_call.1} parent=5 // pred_region
        %s243 = ssub.s32 %s17, 1
        // Predicated region
        $region45: #{tpu_custom_call.1} parent=43 // pred_check
          %p244 = pneg %p85
        $region46: #{tpu_custom_call.1} parent=43 // pred_check_branch
          %246 = sbr.rel (%p244) target = $region48
        $region47: #{tpu_custom_call.1} parent=43 // pred_region
          %247 = dma.done [#allocation3], 1024
        $region48: #{tpu_custom_call.1} parent=43 // pred_fallthru
          _
        // Predicated region
        $region49: #{tpu_custom_call.1} parent=43 // pred_check
          %p248 = pneg %p106
        $region50: #{tpu_custom_call.1} parent=43 // pred_check_branch
          %250 = sbr.rel (%p248) target = $region52
        $region51: #{tpu_custom_call.1} parent=43 // pred_region
          %251 = dma.done [#allocation6], 1024
        $region52: #{tpu_custom_call.1} parent=43 // pred_fallthru
          _
        %s252 = smul.u32 8, %s22
        %p253 = scmp.lt.s32.totalorder %s252, 15
        %s254 = scalar_select %p253, %s252, 15
        %s255 = smul.addr %s254, 4
        %s256 = scalar_lea.vmem %s0, %s255
        %p257 = pneg %p43
        %p258 = pneg %p40
        %p259 = pneg %p64
        %p260 = pneg %p61
        %p261 = pneg %p85
        %p262 = pneg %p82
        %p263 = pneg %p106
        %p264 = pneg %p103
        %p265 = pneg %p127
        %p266 = pneg %p124
        %p267 = pneg %p148
        %p268 = pneg %p145
        %p269 = pneg %p174
        %p270 = pneg %p171
        %s271 = sand.u32 %s161, 1
        %s272 = scalar_lea.sflag [#allocation4], %s271
        %s273 = sand.u32 %s161, 1
        %s274 = smul.addr %s273, 32
        %s275 = scalar_lea.vmem [#allocation7], %s274
        %s276 = smul.u32 8, %s22
        %p277 = scmp.lt.s32.totalorder %s276, 15
        %s278 = scalar_select %p277, %s276, 15
        %s279 = smul.addr %s278, 4
        %s280 = scalar_lea.vmem %s0, %s279
        %s281 = smul.u32 8, %s22
        %s282 = smul.u32 8, %s22
        %v283 = vld [vmem:[%s1] sm:$0xff]
        %v284 = vld [vmem:[%s1 + $0x8] sm:$0xff]
        %v285 = vld [vmem:[%s1 + $0x10] sm:$0xff]
        %v286 = vld [vmem:[%s1 + $0x18] sm:$0xff]
        %v287 = vld [vmem:[%s1 + $0x20] sm:$0xff]
        %v288 = vld [vmem:[%s1 + $0x28] sm:$0xff]
        %v289 = vld [vmem:[%s1 + $0x30] sm:$0xff]
        %v290 = vld [vmem:[%s1 + $0x38] sm:$0xff]
        %v291 = vld [vmem:[%s280] sm:$0x77]
        %v292 = vld [vmem:[%s280 + $0x8] sm:$0x77]
        %v293 = vld [vmem:[%s280 + $0x10] sm:$0x77]
        %v294 = vld [vmem:[%s280 + $0x18] sm:$0x77]
        %v299 = vcombine.high %v291, %v291
        %v300 = vcombine.high %v292, %v292
        %v301 = vcombine.high %v293, %v293
        %v302 = vcombine.high %v294, %v294
        %vm303 = vcmask 23552
        %v305 = vsel %vm303, %v283, 0
        %v308 = vsel %vm303, %v284, 0
        %v311 = vsel %vm303, %v285, 0
        %v314 = vsel %vm303, %v286, 0
        %v317 = vsel %vm303, %v287, 0
        %v320 = vsel %vm303, %v288, 0
        %v323 = vsel %vm303, %v289, 0
        %v326 = vsel %vm303, %v290, 0
        %vm328 = vcmask 1042432
        %v329 = vsel %vm328, %v291, 0
        %v331 = vsel %vm328, %v299, 0
        %v333 = vsel %vm328, %v292, 0
        %v335 = vsel %vm328, %v300, 0
        %v337 = vsel %vm328, %v293, 0
        %v339 = vsel %vm328, %v301, 0
        %v341 = vsel %vm328, %v294, 0
        %v343 = vsel %vm328, %v302, 0
        %345 = vmatprep.subr.mxu0 %v331
        %346 = vmatpush1.msra.mxu0 %v329
        %347 = vmatprep.subr.mxu0 0.0
        %348 = vmatpush1.msra.mxu0 0.0
        %349 = vmatprep.subr.mxu0 0.0
        %350 = vmatpush1.msra.mxu0 0.0
        %351 = vmatprep.subr.mxu0 0.0
        %352 = vmatpush1.msra.mxu0 0.0
        %353 = vmatprep.subr.mxu0 0.0
        %354 = vmatpush1.msra.mxu0 0.0
        %355 = vmatprep.subr.mxu0 0.0
        %356 = vmatpush1.msra.mxu0 0.0
        %357 = vmatprep.subr.mxu0 0.0
        %358 = vmatpush1.msra.mxu0 0.0
        %359 = vmatprep.subr.mxu0 0.0
        %360 = vmatpush1.msra.mxu0 0.0
        %361 = vmatprep.subr.mxu0 0.0
        %362 = vmatpush1.msra.mxu0 0.0
        %363 = vmatprep.subr.mxu0 0.0
        %364 = vmatpush1.msra.mxu0 0.0
        %365 = vmatprep.subr.mxu0 0.0
        %366 = vmatpush1.msra.mxu0 0.0
        %367 = vmatprep.subr.mxu0 0.0
        %368 = vmatpush1.msra.mxu0 0.0
        %369 = vmatprep.subr.mxu0 0.0
        %370 = vmatpush1.msra.mxu0 0.0
        %371 = vmatprep.subr.mxu0 0.0
        %372 = vmatpush1.msra.mxu0 0.0
        %373 = vmatprep.subr.mxu0 0.0
        %374 = vmatpush1.msra.mxu0 0.0
        %375 = vmatprep.subr.mxu0 0.0
        %376 = vmatpush1.msra.mxu0 0.0
        %377 = vmatprep.subr.mxu0 0.0
        %378 = vmatpush1.msra.mxu0 0.0
        %379 = vmatprep.subr.mxu0 0.0
        %380 = vmatpush1.msra.mxu0 0.0
        %381 = vmatprep.subr.mxu0 0.0
        %382 = vmatpush1.msra.mxu0 0.0
        %383 = vmatprep.subr.mxu0 0.0
        %384 = vmatpush1.msra.mxu0 0.0
        %385 = vmatprep.subr.mxu0 0.0
        %386 = vmatpush1.msra.mxu0 0.0
        %387 = vmatprep.subr.mxu0 0.0
        %388 = vmatpush1.msra.mxu0 0.0
        %389 = vmatprep.subr.mxu0 0.0
        %390 = vmatpush1.msra.mxu0 0.0
        %391 = vmatprep.subr.mxu0 0.0
        %392 = vmatpush1.msra.mxu0 0.0
        %393 = vmatprep.subr.mxu0 0.0
        %394 = vmatpush1.msra.mxu0 0.0
        %395 = vmatprep.subr.mxu0 0.0
        %396 = vmatpush1.msra.mxu0 0.0
        %397 = vmatprep.subr.mxu0 0.0
        %398 = vmatpush1.msra.mxu0 0.0
        %399 = vmatprep.subr.mxu0 0.0
        %400 = vmatpush1.msra.mxu0 0.0
        %401 = vmatprep.subr.mxu0 0.0
        %402 = vmatpush1.msra.mxu0 0.0
        %403 = vmatprep.subr.mxu0 0.0
        %404 = vmatpush1.msra.mxu0 0.0
        %405 = vmatprep.subr.mxu0 0.0
        %406 = vmatpush1.msra.mxu0 0.0
        %407 = vmatprep.subr.mxu0 0.0
        %408 = vmatpush1.msra.mxu0 0.0
        %409 = vmatprep.mubr.f32.mxu0 0.0
        %410 = vmatmul.mubr.f32.gmra.mrb[0].mxu0 %v305
        %v411 = vpop.f32.mrb[0].mxu0
        %v412 = vadd.f32 0.0, %v411
        %v413 = vpop.f32.mrb[0].mxu0
        %v414 = vadd.f32 0.0, %v413
        %415 = vmatprep.mubr.f32.mxu0 0.0
        %416 = vmatmul.mubr.f32.gmra.mrb[0].mxu0 %v308
        %v417 = vpop.f32.mrb[0].mxu0
        %v418 = vadd.f32 0.0, %v417
        %v419 = vpop.f32.mrb[0].mxu0
        %v420 = vadd.f32 0.0, %v419
        %421 = vmatprep.mubr.f32.mxu0 0.0
        %422 = vmatmul.mubr.f32.gmra.mrb[0].mxu0 %v311
        %v423 = vpop.f32.mrb[0].mxu0
        %v424 = vadd.f32 0.0, %v423
        %v425 = vpop.f32.mrb[0].mxu0
        %v426 = vadd.f32 0.0, %v425
        %427 = vmatprep.mubr.f32.mxu0 0.0
        %428 = vmatmul.mubr.f32.gmra.mrb[0].mxu0 %v314
        %v429 = vpop.f32.mrb[0].mxu0
        %v430 = vadd.f32 0.0, %v429
        %v431 = vpop.f32.mrb[0].mxu0
        %v432 = vadd.f32 0.0, %v431
        %433 = vmatprep.mubr.f32.mxu0 0.0
        %434 = vmatmul.mubr.f32.gmra.mrb[0].mxu0 %v317
        %v435 = vpop.f32.mrb[0].mxu0
        %v436 = vadd.f32 0.0, %v435
        %v437 = vpop.f32.mrb[0].mxu0
        %v438 = vadd.f32 0.0, %v437
        %439 = vmatprep.mubr.f32.mxu0 0.0
        %440 = vmatmul.mubr.f32.gmra.mrb[0].mxu0 %v320
        %v441 = vpop.f32.mrb[0].mxu0
        %v442 = vadd.f32 0.0, %v441
        %v443 = vpop.f32.mrb[0].mxu0
        %v444 = vadd.f32 0.0, %v443
        %445 = vmatprep.mubr.f32.mxu0 0.0
        %446 = vmatmul.mubr.f32.gmra.mrb[0].mxu0 %v323
        %v447 = vpop.f32.mrb[0].mxu0
        %v448 = vadd.f32 0.0, %v447
        %v449 = vpop.f32.mrb[0].mxu0
        %v450 = vadd.f32 0.0, %v449
        %451 = vmatprep.mubr.f32.mxu0 0.0
        %452 = vmatmul.mubr.f32.gmra.mrb[0].mxu0 %v326
        %v453 = vpop.f32.mrb[0].mxu0
        %v454 = vadd.f32 0.0, %v453
        %v455 = vpop.f32.mrb[0].mxu0
        %v456 = vadd.f32 0.0, %v455
        %457 = vdwg.mxu0
        %458 = vmatprep.subr.mxu0 %v335
        %459 = vmatpush1.msra.mxu0 %v333
        %460 = vmatprep.subr.mxu0 0.0
        %461 = vmatpush1.msra.mxu0 0.0
        %462 = vmatprep.subr.mxu0 0.0
        %463 = vmatpush1.msra.mxu0 0.0
        %464 = vmatprep.subr.mxu0 0.0
        %465 = vmatpush1.msra.mxu0 0.0
        %466 = vmatprep.subr.mxu0 0.0
        %467 = vmatpush1.msra.mxu0 0.0
        %468 = vmatprep.subr.mxu0 0.0
        %469 = vmatpush1.msra.mxu0 0.0
        %470 = vmatprep.subr.mxu0 0.0
        %471 = vmatpush1.msra.mxu0 0.0
        %472 = vmatprep.subr.mxu0 0.0
        %473 = vmatpush1.msra.mxu0 0.0
        %474 = vmatprep.subr.mxu0 0.0
        %475 = vmatpush1.msra.mxu0 0.0
        %476 = vmatprep.subr.mxu0 0.0
        %477 = vmatpush1.msra.mxu0 0.0
        %478 = vmatprep.subr.mxu0 0.0
        %479 = vmatpush1.msra.mxu0 0.0
        %480 = vmatprep.subr.mxu0 0.0
        %481 = vmatpush1.msra.mxu0 0.0
        %482 = vmatprep.subr.mxu0 0.0
        %483 = vmatpush1.msra.mxu0 0.0
        %484 = vmatprep.subr.mxu0 0.0
        %485 = vmatpush1.msra.mxu0 0.0
        %486 = vmatprep.subr.mxu0 0.0
        %487 = vmatpush1.msra.mxu0 0.0
        %488 = vmatprep.subr.mxu0 0.0
        %489 = vmatpush1.msra.mxu0 0.0
        %490 = vmatprep.subr.mxu0 0.0
        %491 = vmatpush1.msra.mxu0 0.0
        %492 = vmatprep.subr.mxu0 0.0
        %493 = vmatpush1.msra.mxu0 0.0
        %494 = vmatprep.subr.mxu0 0.0
        %495 = vmatpush1.msra.mxu0 0.0
        %496 = vmatprep.subr.mxu0 0.0
        %497 = vmatpush1.msra.mxu0 0.0
        %498 = vmatprep.subr.mxu0 0.0
        %499 = vmatpush1.msra.mxu0 0.0
        %500 = vmatprep.subr.mxu0 0.0
        %501 = vmatpush1.msra.mxu0 0.0
        %502 = vmatprep.subr.mxu0 0.0
        %503 = vmatpush1.msra.mxu0 0.0
        %504 = vmatprep.subr.mxu0 0.0
        %505 = vmatpush1.msra.mxu0 0.0
        %506 = vmatprep.subr.mxu0 0.0
        %507 = vmatpush1.msra.mxu0 0.0
        %508 = vmatprep.subr.mxu0 0.0
        %509 = vmatpush1.msra.mxu0 0.0
        %510 = vmatprep.subr.mxu0 0.0
        %511 = vmatpush1.msra.mxu0 0.0
        %512 = vmatprep.subr.mxu0 0.0
        %513 = vmatpush1.msra.mxu0 0.0
        %514 = vmatprep.subr.mxu0 0.0
        %515 = vmatpush1.msra.mxu0 0.0
        %516 = vmatprep.subr.mxu0 0.0
        %517 = vmatpush1.msra.mxu0 0.0
        %518 = vmatprep.subr.mxu0 0.0
        %519 = vmatpush1.msra.mxu0 0.0
        %520 = vmatprep.subr.mxu0 0.0
        %521 = vmatpush1.msra.mxu0 0.0
        %522 = vmatprep.mubr.f32.mxu0 0.0
        %523 = vmatmul.mubr.f32.gmra.mrb[0].mxu0 %v305
        %v524 = vpop.f32.mrb[0].mxu0
        %v525 = vadd.f32 0.0, %v524
        %v526 = vpop.f32.mrb[0].mxu0
        %v527 = vadd.f32 0.0, %v526
        %528 = vmatprep.mubr.f32.mxu0 0.0
        %529 = vmatmul.mubr.f32.gmra.mrb[0].mxu0 %v308
        %v530 = vpop.f32.mrb[0].mxu0
        %v531 = vadd.f32 0.0, %v530
        %v532 = vpop.f32.mrb[0].mxu0
        %v533 = vadd.f32 0.0, %v532
        %534 = vmatprep.mubr.f32.mxu0 0.0
        %535 = vmatmul.mubr.f32.gmra.mrb[0].mxu0 %v311
        %v536 = vpop.f32.mrb[0].mxu0
        %v537 = vadd.f32 0.0, %v536
        %v538 = vpop.f32.mrb[0].mxu0
        %v539 = vadd.f32 0.0, %v538
        %540 = vmatprep.mubr.f32.mxu0 0.0
        %541 = vmatmul.mubr.f32.gmra.mrb[0].mxu0 %v314
        %v542 = vpop.f32.mrb[0].mxu0
        %v543 = vadd.f32 0.0, %v542
        %v544 = vpop.f32.mrb[0].mxu0
        %v545 = vadd.f32 0.0, %v544
        %546 = vmatprep.mubr.f32.mxu0 0.0
        %547 = vmatmul.mubr.f32.gmra.mrb[0].mxu0 %v317
        %v548 = vpop.f32.mrb[0].mxu0
        %v549 = vadd.f32 0.0, %v548
        %v550 = vpop.f32.mrb[0].mxu0
        %v551 = vadd.f32 0.0, %v550
        %552 = vmatprep.mubr.f32.mxu0 0.0
        %553 = vmatmul.mubr.f32.gmra.mrb[0].mxu0 %v320
        %v554 = vpop.f32.mrb[0].mxu0
        %v555 = vadd.f32 0.0, %v554
        %v556 = vpop.f32.mrb[0].mxu0
        %v557 = vadd.f32 0.0, %v556
        %558 = vmatprep.mubr.f32.mxu0 0.0
        %559 = vmatmul.mubr.f32.gmra.mrb[0].mxu0 %v323
        %v560 = vpop.f32.mrb[0].mxu0
        %v561 = vadd.f32 0.0, %v560
        %v562 = vpop.f32.mrb[0].mxu0
        %v563 = vadd.f32 0.0, %v562
        %564 = vmatprep.mubr.f32.mxu0 0.0
        %565 = vmatmul.mubr.f32.gmra.mrb[0].mxu0 %v326
        %v566 = vpop.f32.mrb[0].mxu0
        %v567 = vadd.f32 0.0, %v566
        %v568 = vpop.f32.mrb[0].mxu0
        %v569 = vadd.f32 0.0, %v568
        %570 = vdwg.mxu0
        %571 = vmatprep.subr.mxu0 %v339
        %572 = vmatpush1.msra.mxu0 %v337
        %573 = vmatprep.subr.mxu0 0.0
        %574 = vmatpush1.msra.mxu0 0.0
        %575 = vmatprep.subr.mxu0 0.0
        %576 = vmatpush1.msra.mxu0 0.0
        %577 = vmatprep.subr.mxu0 0.0
        %578 = vmatpush1.msra.mxu0 0.0
        %579 = vmatprep.subr.mxu0 0.0
        %580 = vmatpush1.msra.mxu0 0.0
        %581 = vmatprep.subr.mxu0 0.0
        %582 = vmatpush1.msra.mxu0 0.0
        %583 = vmatprep.subr.mxu0 0.0
        %584 = vmatpush1.msra.mxu0 0.0
        %585 = vmatprep.subr.mxu0 0.0
        %586 = vmatpush1.msra.mxu0 0.0
        %587 = vmatprep.subr.mxu0 0.0
        %588 = vmatpush1.msra.mxu0 0.0
        %589 = vmatprep.subr.mxu0 0.0
        %590 = vmatpush1.msra.mxu0 0.0
        %591 = vmatprep.subr.mxu0 0.0
        %592 = vmatpush1.msra.mxu0 0.0
        %593 = vmatprep.subr.mxu0 0.0
        %594 = vmatpush1.msra.mxu0 0.0
        %595 = vmatprep.subr.mxu0 0.0
        %596 = vmatpush1.msra.mxu0 0.0
        %597 = vmatprep.subr.mxu0 0.0
        %598 = vmatpush1.msra.mxu0 0.0
        %599 = vmatprep.subr.mxu0 0.0
        %600 = vmatpush1.msra.mxu0 0.0
        %601 = vmatprep.subr.mxu0 0.0
        %602 = vmatpush1.msra.mxu0 0.0
        %603 = vmatprep.subr.mxu0 0.0
        %604 = vmatpush1.msra.mxu0 0.0
        %605 = vmatprep.subr.mxu0 0.0
        %606 = vmatpush1.msra.mxu0 0.0
        %607 = vmatprep.subr.mxu0 0.0
        %608 = vmatpush1.msra.mxu0 0.0
        %609 = vmatprep.subr.mxu0 0.0
        %610 = vmatpush1.msra.mxu0 0.0
        %611 = vmatprep.subr.mxu0 0.0
        %612 = vmatpush1.msra.mxu0 0.0
        %613 = vmatprep.subr.mxu0 0.0
        %614 = vmatpush1.msra.mxu0 0.0
        %615 = vmatprep.subr.mxu0 0.0
        %616 = vmatpush1.msra.mxu0 0.0
        %617 = vmatprep.subr.mxu0 0.0
        %618 = vmatpush1.msra.mxu0 0.0
        %619 = vmatprep.subr.mxu0 0.0
        %620 = vmatpush1.msra.mxu0 0.0
        %621 = vmatprep.subr.mxu0 0.0
        %622 = vmatpush1.msra.mxu0 0.0
        %623 = vmatprep.subr.mxu0 0.0
        %624 = vmatpush1.msra.mxu0 0.0
        %625 = vmatprep.subr.mxu0 0.0
        %626 = vmatpush1.msra.mxu0 0.0
        %627 = vmatprep.subr.mxu0 0.0
        %628 = vmatpush1.msra.mxu0 0.0
        %629 = vmatprep.subr.mxu0 0.0
        %630 = vmatpush1.msra.mxu0 0.0
        %631 = vmatprep.subr.mxu0 0.0
        %632 = vmatpush1.msra.mxu0 0.0
        %633 = vmatprep.subr.mxu0 0.0
        %634 = vmatpush1.msra.mxu0 0.0
        %635 = vmatprep.mubr.f32.mxu0 0.0
        %636 = vmatmul.mubr.f32.gmra.mrb[0].mxu0 %v305
        %v637 = vpop.f32.mrb[0].mxu0
        %v638 = vadd.f32 0.0, %v637
        %v639 = vpop.f32.mrb[0].mxu0
        %v640 = vadd.f32 0.0, %v639
        %641 = vmatprep.mubr.f32.mxu0 0.0
        %642 = vmatmul.mubr.f32.gmra.mrb[0].mxu0 %v308
        %v643 = vpop.f32.mrb[0].mxu0
        %v644 = vadd.f32 0.0, %v643
        %v645 = vpop.f32.mrb[0].mxu0
        %v646 = vadd.f32 0.0, %v645
        %647 = vmatprep.mubr.f32.mxu0 0.0
        %648 = vmatmul.mubr.f32.gmra.mrb[0].mxu0 %v311
        %v649 = vpop.f32.mrb[0].mxu0
        %v650 = vadd.f32 0.0, %v649
        %v651 = vpop.f32.mrb[0].mxu0
        %v652 = vadd.f32 0.0, %v651
        %653 = vmatprep.mubr.f32.mxu0 0.0
        %654 = vmatmul.mubr.f32.gmra.mrb[0].mxu0 %v314
        %v655 = vpop.f32.mrb[0].mxu0
        %v656 = vadd.f32 0.0, %v655
        %v657 = vpop.f32.mrb[0].mxu0
        %v658 = vadd.f32 0.0, %v657
        %659 = vmatprep.mubr.f32.mxu0 0.0
        %660 = vmatmul.mubr.f32.gmra.mrb[0].mxu0 %v317
        %v661 = vpop.f32.mrb[0].mxu0
        %v662 = vadd.f32 0.0, %v661
        %v663 = vpop.f32.mrb[0].mxu0
        %v664 = vadd.f32 0.0, %v663
        %665 = vmatprep.mubr.f32.mxu0 0.0
        %666 = vmatmul.mubr.f32.gmra.mrb[0].mxu0 %v320
        %v667 = vpop.f32.mrb[0].mxu0
        %v668 = vadd.f32 0.0, %v667
        %v669 = vpop.f32.mrb[0].mxu0
        %v670 = vadd.f32 0.0, %v669
        %671 = vmatprep.mubr.f32.mxu0 0.0
        %672 = vmatmul.mubr.f32.gmra.mrb[0].mxu0 %v323
        %v673 = vpop.f32.mrb[0].mxu0
        %v674 = vadd.f32 0.0, %v673
        %v675 = vpop.f32.mrb[0].mxu0
        %v676 = vadd.f32 0.0, %v675
        %677 = vmatprep.mubr.f32.mxu0 0.0
        %678 = vmatmul.mubr.f32.gmra.mrb[0].mxu0 %v326
        %v679 = vpop.f32.mrb[0].mxu0
        %v680 = vadd.f32 0.0, %v679
        %v681 = vpop.f32.mrb[0].mxu0
        %v682 = vadd.f32 0.0, %v681
        %683 = vdwg.mxu0
        %684 = vmatprep.subr.mxu0 %v343
        %685 = vmatpush1.msra.mxu0 %v341
        %686 = vmatprep.subr.mxu0 0.0
        %687 = vmatpush1.msra.mxu0 0.0
        %688 = vmatprep.subr.mxu0 0.0
        %689 = vmatpush1.msra.mxu0 0.0
        %690 = vmatprep.subr.mxu0 0.0
        %691 = vmatpush1.msra.mxu0 0.0
        %692 = vmatprep.subr.mxu0 0.0
        %693 = vmatpush1.msra.mxu0 0.0
        %694 = vmatprep.subr.mxu0 0.0
        %695 = vmatpush1.msra.mxu0 0.0
        %696 = vmatprep.subr.mxu0 0.0
        %697 = vmatpush1.msra.mxu0 0.0
        %698 = vmatprep.subr.mxu0 0.0
        %699 = vmatpush1.msra.mxu0 0.0
        %700 = vmatprep.subr.mxu0 0.0
        %701 = vmatpush1.msra.mxu0 0.0
        %702 = vmatprep.subr.mxu0 0.0
        %703 = vmatpush1.msra.mxu0 0.0
        %704 = vmatprep.subr.mxu0 0.0
        %705 = vmatpush1.msra.mxu0 0.0
        %706 = vmatprep.subr.mxu0 0.0
        %707 = vmatpush1.msra.mxu0 0.0
        %708 = vmatprep.subr.mxu0 0.0
        %709 = vmatpush1.msra.mxu0 0.0
        %710 = vmatprep.subr.mxu0 0.0
        %711 = vmatpush1.msra.mxu0 0.0
        %712 = vmatprep.subr.mxu0 0.0
        %713 = vmatpush1.msra.mxu0 0.0
        %714 = vmatprep.subr.mxu0 0.0
        %715 = vmatpush1.msra.mxu0 0.0
        %716 = vmatprep.subr.mxu0 0.0
        %717 = vmatpush1.msra.mxu0 0.0
        %718 = vmatprep.subr.mxu0 0.0
        %719 = vmatpush1.msra.mxu0 0.0
        %720 = vmatprep.subr.mxu0 0.0
        %721 = vmatpush1.msra.mxu0 0.0
        %722 = vmatprep.subr.mxu0 0.0
        %723 = vmatpush1.msra.mxu0 0.0
        %724 = vmatprep.subr.mxu0 0.0
        %725 = vmatpush1.msra.mxu0 0.0
        %726 = vmatprep.subr.mxu0 0.0
        %727 = vmatpush1.msra.mxu0 0.0
        %728 = vmatprep.subr.mxu0 0.0
        %729 = vmatpush1.msra.mxu0 0.0
        %730 = vmatprep.subr.mxu0 0.0
        %731 = vmatpush1.msra.mxu0 0.0
        %732 = vmatprep.subr.mxu0 0.0
        %733 = vmatpush1.msra.mxu0 0.0
        %734 = vmatprep.subr.mxu0 0.0
        %735 = vmatpush1.msra.mxu0 0.0
        %736 = vmatprep.subr.mxu0 0.0
        %737 = vmatpush1.msra.mxu0 0.0
        %738 = vmatprep.subr.mxu0 0.0
        %739 = vmatpush1.msra.mxu0 0.0
        %740 = vmatprep.subr.mxu0 0.0
        %741 = vmatpush1.msra.mxu0 0.0
        %742 = vmatprep.subr.mxu0 0.0
        %743 = vmatpush1.msra.mxu0 0.0
        %744 = vmatprep.subr.mxu0 0.0
        %745 = vmatpush1.msra.mxu0 0.0
        %746 = vmatprep.subr.mxu0 0.0
        %747 = vmatpush1.msra.mxu0 0.0
        %748 = vmatprep.mubr.f32.mxu0 0.0
        %749 = vmatmul.mubr.f32.gmra.mrb[0].mxu0 %v305
        %v750 = vpop.f32.mrb[0].mxu0
        %v751 = vadd.f32 0.0, %v750
        %v752 = vpop.f32.mrb[0].mxu0
        %v753 = vadd.f32 0.0, %v752
        %754 = vmatprep.mubr.f32.mxu0 0.0
        %755 = vmatmul.mubr.f32.gmra.mrb[0].mxu0 %v308
        %v756 = vpop.f32.mrb[0].mxu0
        %v757 = vadd.f32 0.0, %v756
        %v758 = vpop.f32.mrb[0].mxu0
        %v759 = vadd.f32 0.0, %v758
        %760 = vmatprep.mubr.f32.mxu0 0.0
        %761 = vmatmul.mubr.f32.gmra.mrb[0].mxu0 %v311
        %v762 = vpop.f32.mrb[0].mxu0
        %v763 = vadd.f32 0.0, %v762
        %v764 = vpop.f32.mrb[0].mxu0
        %v765 = vadd.f32 0.0, %v764
        %766 = vmatprep.mubr.f32.mxu0 0.0
        %767 = vmatmul.mubr.f32.gmra.mrb[0].mxu0 %v314
        %v768 = vpop.f32.mrb[0].mxu0
        %v769 = vadd.f32 0.0, %v768
        %v770 = vpop.f32.mrb[0].mxu0
        %v771 = vadd.f32 0.0, %v770
        %772 = vmatprep.mubr.f32.mxu0 0.0
        %773 = vmatmul.mubr.f32.gmra.mrb[0].mxu0 %v317
        %v774 = vpop.f32.mrb[0].mxu0
        %v775 = vadd.f32 0.0, %v774
        %v776 = vpop.f32.mrb[0].mxu0
        %v777 = vadd.f32 0.0, %v776
        %778 = vmatprep.mubr.f32.mxu0 0.0
        %779 = vmatmul.mubr.f32.gmra.mrb[0].mxu0 %v320
        %v780 = vpop.f32.mrb[0].mxu0
        %v781 = vadd.f32 0.0, %v780
        %v782 = vpop.f32.mrb[0].mxu0
        %v783 = vadd.f32 0.0, %v782
        %784 = vmatprep.mubr.f32.mxu0 0.0
        %785 = vmatmul.mubr.f32.gmra.mrb[0].mxu0 %v323
        %v786 = vpop.f32.mrb[0].mxu0
        %v787 = vadd.f32 0.0, %v786
        %v788 = vpop.f32.mrb[0].mxu0
        %v789 = vadd.f32 0.0, %v788
        %790 = vmatprep.mubr.f32.mxu0 0.0
        %791 = vmatmul.mubr.f32.gmra.mrb[0].mxu0 %v326
        %v792 = vpop.f32.mrb[0].mxu0
        %v793 = vadd.f32 0.0, %v792
        %v794 = vpop.f32.mrb[0].mxu0
        %v795 = vadd.f32 0.0, %v794
        %796 = vdwg.mxu0
        %v797 = vmax.f32 %v412, 0.0
        %v798 = vmax.f32 %v414, 0.0
        %v799 = vmax.f32 %v525, 0.0
        %v800 = vmax.f32 %v527, 0.0
        %v801 = vmax.f32 %v638, 0.0
        %v802 = vmax.f32 %v640, 0.0
        %v803 = vmax.f32 %v751, 0.0
        %v804 = vmax.f32 %v753, 0.0
        %v805 = vmax.f32 %v418, 0.0
        %v806 = vmax.f32 %v420, 0.0
        %v807 = vmax.f32 %v531, 0.0
        %v808 = vmax.f32 %v533, 0.0
        %v809 = vmax.f32 %v644, 0.0
        %v810 = vmax.f32 %v646, 0.0
        %v811 = vmax.f32 %v757, 0.0
        %v812 = vmax.f32 %v759, 0.0
        %v813 = vmax.f32 %v424, 0.0
        %v814 = vmax.f32 %v426, 0.0
        %v815 = vmax.f32 %v537, 0.0
        %v816 = vmax.f32 %v539, 0.0
        %v817 = vmax.f32 %v650, 0.0
        %v818 = vmax.f32 %v652, 0.0
        %v819 = vmax.f32 %v763, 0.0
        %v820 = vmax.f32 %v765, 0.0
        %v821 = vmax.f32 %v430, 0.0
        %v822 = vmax.f32 %v432, 0.0
        %v823 = vmax.f32 %v543, 0.0
        %v824 = vmax.f32 %v545, 0.0
        %v825 = vmax.f32 %v656, 0.0
        %v826 = vmax.f32 %v658, 0.0
        %v827 = vmax.f32 %v769, 0.0
        %v828 = vmax.f32 %v771, 0.0
        %v829 = vmax.f32 %v436, 0.0
        %v830 = vmax.f32 %v438, 0.0
        %v831 = vmax.f32 %v549, 0.0
        %v832 = vmax.f32 %v551, 0.0
        %v833 = vmax.f32 %v662, 0.0
        %v834 = vmax.f32 %v664, 0.0
        %v835 = vmax.f32 %v775, 0.0
        %v836 = vmax.f32 %v777, 0.0
        %v837 = vmax.f32 %v442, 0.0
        %v838 = vmax.f32 %v444, 0.0
        %v839 = vmax.f32 %v555, 0.0
        %v840 = vmax.f32 %v557, 0.0
        %v841 = vmax.f32 %v668, 0.0
        %v842 = vmax.f32 %v670, 0.0
        %v843 = vmax.f32 %v781, 0.0
        %v844 = vmax.f32 %v783, 0.0
        %v845 = vmax.f32 %v448, 0.0
        %v846 = vmax.f32 %v450, 0.0
        %v847 = vmax.f32 %v561, 0.0
        %v848 = vmax.f32 %v563, 0.0
        %v849 = vmax.f32 %v674, 0.0
        %v850 = vmax.f32 %v676, 0.0
        %v851 = vmax.f32 %v787, 0.0
        %v852 = vmax.f32 %v789, 0.0
        %v853 = vmax.f32 %v454, 0.0
        %v854 = vmax.f32 %v456, 0.0
        %v855 = vmax.f32 %v567, 0.0
        %v856 = vmax.f32 %v569, 0.0
        %v857 = vmax.f32 %v680, 0.0
        %v858 = vmax.f32 %v682, 0.0
        %v859 = vmax.f32 %v793, 0.0
        %v860 = vmax.f32 %v795, 0.0
        %v861 = vld [vmem:[#allocation2] sm:$0xff]
        %v862 = vld [vmem:[#allocation2 + $0x8] sm:$0xff]
        %v863 = vld [vmem:[#allocation2 + $0x10] sm:$0xff]
        %v864 = vld [vmem:[#allocation2 + $0x18] sm:$0xff]
        %v865 = vld [vmem:[#allocation2 + $0x20] sm:$0xff]
        %v866 = vld [vmem:[#allocation2 + $0x28] sm:$0xff]
        %v867 = vld [vmem:[#allocation2 + $0x30] sm:$0xff]
        %v868 = vld [vmem:[#allocation2 + $0x38] sm:$0xff]
        %vm869 = vcmask 523264
        %v871 = vsel %vm869, %v861, 0
        %v874 = vsel %vm869, %v862, 0
        %v877 = vsel %vm869, %v863, 0
        %v880 = vsel %vm869, %v864, 0
        %v883 = vsel %vm869, %v865, 0
        %v886 = vsel %vm869, %v866, 0
        %v889 = vsel %vm869, %v867, 0
        %v892 = vsel %vm869, %v868, 0
        %894 = vmatprep.subr.mxu0 %v798
        %895 = vmatpush1.msra.mxu0 %v797
        %896 = vmatprep.subr.mxu0 %v806
        %897 = vmatpush1.msra.mxu0 %v805
        %898 = vmatprep.subr.mxu0 %v814
        %899 = vmatpush1.msra.mxu0 %v813
        %900 = vmatprep.subr.mxu0 %v822
        %901 = vmatpush1.msra.mxu0 %v821
        %902 = vmatprep.subr.mxu0 %v830
        %903 = vmatpush1.msra.mxu0 %v829
        %904 = vmatprep.subr.mxu0 %v838
        %905 = vmatpush1.msra.mxu0 %v837
        %906 = vmatprep.subr.mxu0 %v846
        %907 = vmatpush1.msra.mxu0 %v845
        %908 = vmatprep.subr.mxu0 %v854
        %909 = vmatpush1.msra.mxu0 %v853
        %910 = vmatprep.subr.mxu0 0.0
        %911 = vmatpush1.msra.mxu0 0.0
        %912 = vmatprep.subr.mxu0 0.0
        %913 = vmatpush1.msra.mxu0 0.0
        %914 = vmatprep.subr.mxu0 0.0
        %915 = vmatpush1.msra.mxu0 0.0
        %916 = vmatprep.subr.mxu0 0.0
        %917 = vmatpush1.msra.mxu0 0.0
        %918 = vmatprep.subr.mxu0 0.0
        %919 = vmatpush1.msra.mxu0 0.0
        %920 = vmatprep.subr.mxu0 0.0
        %921 = vmatpush1.msra.mxu0 0.0
        %922 = vmatprep.subr.mxu0 0.0
        %923 = vmatpush1.msra.mxu0 0.0
        %924 = vmatprep.subr.mxu0 0.0
        %925 = vmatpush1.msra.mxu0 0.0
        %926 = vmatprep.subr.mxu0 0.0
        %927 = vmatpush1.msra.mxu0 0.0
        %928 = vmatprep.subr.mxu0 0.0
        %929 = vmatpush1.msra.mxu0 0.0
        %930 = vmatprep.subr.mxu0 0.0
        %931 = vmatpush1.msra.mxu0 0.0
        %932 = vmatprep.subr.mxu0 0.0
        %933 = vmatpush1.msra.mxu0 0.0
        %934 = vmatprep.subr.mxu0 0.0
        %935 = vmatpush1.msra.mxu0 0.0
        %936 = vmatprep.subr.mxu0 0.0
        %937 = vmatpush1.msra.mxu0 0.0
        %938 = vmatprep.subr.mxu0 0.0
        %939 = vmatpush1.msra.mxu0 0.0
        %940 = vmatprep.subr.mxu0 0.0
        %941 = vmatpush1.msra.mxu0 0.0
        %942 = vmatprep.subr.mxu0 0.0
        %943 = vmatpush1.msra.mxu0 0.0
        %944 = vmatprep.subr.mxu0 0.0
        %945 = vmatpush1.msra.mxu0 0.0
        %946 = vmatprep.subr.mxu0 0.0
        %947 = vmatpush1.msra.mxu0 0.0
        %948 = vmatprep.subr.mxu0 0.0
        %949 = vmatpush1.msra.mxu0 0.0
        %950 = vmatprep.subr.mxu0 0.0
        %951 = vmatpush1.msra.mxu0 0.0
        %952 = vmatprep.subr.mxu0 0.0
        %953 = vmatpush1.msra.mxu0 0.0
        %954 = vmatprep.subr.mxu0 0.0
        %955 = vmatpush1.msra.mxu0 0.0
        %956 = vmatprep.subr.mxu0 0.0
        %957 = vmatpush1.msra.mxu0 0.0
        %958 = vmatprep.mubr.f32.mxu0 0.0
        %959 = vmatmul.mubr.f32.gmra.mrb[0].mxu0 %v871
        %v960 = vpop.f32.mrb[0].mxu0
        %v961 = vadd.f32 0.0, %v960
        %v962 = vpop.f32.mrb[0].mxu0
        %v963 = vadd.f32 0.0, %v962
        %964 = vmatprep.mubr.f32.mxu0 0.0
        %965 = vmatmul.mubr.f32.gmra.mrb[0].mxu0 %v874
        %v966 = vpop.f32.mrb[0].mxu0
        %v967 = vadd.f32 0.0, %v966
        %v968 = vpop.f32.mrb[0].mxu0
        %v969 = vadd.f32 0.0, %v968
        %970 = vmatprep.mubr.f32.mxu0 0.0
        %971 = vmatmul.mubr.f32.gmra.mrb[0].mxu0 %v877
        %v972 = vpop.f32.mrb[0].mxu0
        %v973 = vadd.f32 0.0, %v972
        %v974 = vpop.f32.mrb[0].mxu0
        %v975 = vadd.f32 0.0, %v974
        %976 = vmatprep.mubr.f32.mxu0 0.0
        %977 = vmatmul.mubr.f32.gmra.mrb[0].mxu0 %v880
        %v978 = vpop.f32.mrb[0].mxu0
        %v979 = vadd.f32 0.0, %v978
        %v980 = vpop.f32.mrb[0].mxu0
        %v981 = vadd.f32 0.0, %v980
        %982 = vmatprep.mubr.f32.mxu0 0.0
        %983 = vmatmul.mubr.f32.gmra.mrb[0].mxu0 %v883
        %v984 = vpop.f32.mrb[0].mxu0
        %v985 = vadd.f32 0.0, %v984
        %v986 = vpop.f32.mrb[0].mxu0
        %v987 = vadd.f32 0.0, %v986
        %988 = vmatprep.mubr.f32.mxu0 0.0
        %989 = vmatmul.mubr.f32.gmra.mrb[0].mxu0 %v886
        %v990 = vpop.f32.mrb[0].mxu0
        %v991 = vadd.f32 0.0, %v990
        %v992 = vpop.f32.mrb[0].mxu0
        %v993 = vadd.f32 0.0, %v992
        %994 = vmatprep.mubr.f32.mxu0 0.0
        %995 = vmatmul.mubr.f32.gmra.mrb[0].mxu0 %v889
        %v996 = vpop.f32.mrb[0].mxu0
        %v997 = vadd.f32 0.0, %v996
        %v998 = vpop.f32.mrb[0].mxu0
        %v999 = vadd.f32 0.0, %v998
        %1000 = vmatprep.mubr.f32.mxu0 0.0
        %1001 = vmatmul.mubr.f32.gmra.mrb[0].mxu0 %v892
        %v1002 = vpop.f32.mrb[0].mxu0
        %v1003 = vadd.f32 0.0, %v1002
        %v1004 = vpop.f32.mrb[0].mxu0
        %v1005 = vadd.f32 0.0, %v1004
        %1006 = vdwg.mxu0
        %1007 = vmatprep.subr.mxu0 %v800
        %1008 = vmatpush1.msra.mxu0 %v799
        %1009 = vmatprep.subr.mxu0 %v808
        %1010 = vmatpush1.msra.mxu0 %v807
        %1011 = vmatprep.subr.mxu0 %v816
        %1012 = vmatpush1.msra.mxu0 %v815
        %1013 = vmatprep.subr.mxu0 %v824
        %1014 = vmatpush1.msra.mxu0 %v823
        %1015 = vmatprep.subr.mxu0 %v832
        %1016 = vmatpush1.msra.mxu0 %v831
        %1017 = vmatprep.subr.mxu0 %v840
        %1018 = vmatpush1.msra.mxu0 %v839
        %1019 = vmatprep.subr.mxu0 %v848
        %1020 = vmatpush1.msra.mxu0 %v847
        %1021 = vmatprep.subr.mxu0 %v856
        %1022 = vmatpush1.msra.mxu0 %v855
        %1023 = vmatprep.subr.mxu0 0.0
        %1024 = vmatpush1.msra.mxu0 0.0
        %1025 = vmatprep.subr.mxu0 0.0
        %1026 = vmatpush1.msra.mxu0 0.0
        %1027 = vmatprep.subr.mxu0 0.0
        %1028 = vmatpush1.msra.mxu0 0.0
        %1029 = vmatprep.subr.mxu0 0.0
        %1030 = vmatpush1.msra.mxu0 0.0
        %1031 = vmatprep.subr.mxu0 0.0
        %1032 = vmatpush1.msra.mxu0 0.0
        %1033 = vmatprep.subr.mxu0 0.0
        %1034 = vmatpush1.msra.mxu0 0.0
        %1035 = vmatprep.subr.mxu0 0.0
        %1036 = vmatpush1.msra.mxu0 0.0
        %1037 = vmatprep.subr.mxu0 0.0
        %1038 = vmatpush1.msra.mxu0 0.0
        %1039 = vmatprep.subr.mxu0 0.0
        %1040 = vmatpush1.msra.mxu0 0.0
        %1041 = vmatprep.subr.mxu0 0.0
        %1042 = vmatpush1.msra.mxu0 0.0
        %1043 = vmatprep.subr.mxu0 0.0
        %1044 = vmatpush1.msra.mxu0 0.0
        %1045 = vmatprep.subr.mxu0 0.0
        %1046 = vmatpush1.msra.mxu0 0.0
        %1047 = vmatprep.subr.mxu0 0.0
        %1048 = vmatpush1.msra.mxu0 0.0
        %1049 = vmatprep.subr.mxu0 0.0
        %1050 = vmatpush1.msra.mxu0 0.0
        %1051 = vmatprep.subr.mxu0 0.0
        %1052 = vmatpush1.msra.mxu0 0.0
        %1053 = vmatprep.subr.mxu0 0.0
        %1054 = vmatpush1.msra.mxu0 0.0
        %1055 = vmatprep.subr.mxu0 0.0
        %1056 = vmatpush1.msra.mxu0 0.0
        %1057 = vmatprep.subr.mxu0 0.0
        %1058 = vmatpush1.msra.mxu0 0.0
        %1059 = vmatprep.subr.mxu0 0.0
        %1060 = vmatpush1.msra.mxu0 0.0
        %1061 = vmatprep.subr.mxu0 0.0
        %1062 = vmatpush1.msra.mxu0 0.0
        %1063 = vmatprep.subr.mxu0 0.0
        %1064 = vmatpush1.msra.mxu0 0.0
        %1065 = vmatprep.subr.mxu0 0.0
        %1066 = vmatpush1.msra.mxu0 0.0
        %1067 = vmatprep.subr.mxu0 0.0
        %1068 = vmatpush1.msra.mxu0 0.0
        %1069 = vmatprep.subr.mxu0 0.0
        %1070 = vmatpush1.msra.mxu0 0.0
        %1071 = vmatprep.mubr.f32.mxu0 0.0
        %1072 = vmatmul.mubr.f32.gmra.mrb[0].mxu0 %v871
        %v1073 = vpop.f32.mrb[0].mxu0
        %v1074 = vadd.f32 0.0, %v1073
        %v1075 = vpop.f32.mrb[0].mxu0
        %v1076 = vadd.f32 0.0, %v1075
        %1077 = vmatprep.mubr.f32.mxu0 0.0
        %1078 = vmatmul.mubr.f32.gmra.mrb[0].mxu0 %v874
        %v1079 = vpop.f32.mrb[0].mxu0
        %v1080 = vadd.f32 0.0, %v1079
        %v1081 = vpop.f32.mrb[0].mxu0
        %v1082 = vadd.f32 0.0, %v1081
        %1083 = vmatprep.mubr.f32.mxu0 0.0
        %1084 = vmatmul.mubr.f32.gmra.mrb[0].mxu0 %v877
        %v1085 = vpop.f32.mrb[0].mxu0
        %v1086 = vadd.f32 0.0, %v1085
        %v1087 = vpop.f32.mrb[0].mxu0
        %v1088 = vadd.f32 0.0, %v1087
        %1089 = vmatprep.mubr.f32.mxu0 0.0
        %1090 = vmatmul.mubr.f32.gmra.mrb[0].mxu0 %v880
        %v1091 = vpop.f32.mrb[0].mxu0
        %v1092 = vadd.f32 0.0, %v1091
        %v1093 = vpop.f32.mrb[0].mxu0
        %v1094 = vadd.f32 0.0, %v1093
        %1095 = vmatprep.mubr.f32.mxu0 0.0
        %1096 = vmatmul.mubr.f32.gmra.mrb[0].mxu0 %v883
        %v1097 = vpop.f32.mrb[0].mxu0
        %v1098 = vadd.f32 0.0, %v1097
        %v1099 = vpop.f32.mrb[0].mxu0
        %v1100 = vadd.f32 0.0, %v1099
        %1101 = vmatprep.mubr.f32.mxu0 0.0
        %1102 = vmatmul.mubr.f32.gmra.mrb[0].mxu0 %v886
        %v1103 = vpop.f32.mrb[0].mxu0
        %v1104 = vadd.f32 0.0, %v1103
        %v1105 = vpop.f32.mrb[0].mxu0
        %v1106 = vadd.f32 0.0, %v1105
        %1107 = vmatprep.mubr.f32.mxu0 0.0
        %1108 = vmatmul.mubr.f32.gmra.mrb[0].mxu0 %v889
        %v1109 = vpop.f32.mrb[0].mxu0
        %v1110 = vadd.f32 0.0, %v1109
        %v1111 = vpop.f32.mrb[0].mxu0
        %v1112 = vadd.f32 0.0, %v1111
        %1113 = vmatprep.mubr.f32.mxu0 0.0
        %1114 = vmatmul.mubr.f32.gmra.mrb[0].mxu0 %v892
        %v1115 = vpop.f32.mrb[0].mxu0
        %v1116 = vadd.f32 0.0, %v1115
        %v1117 = vpop.f32.mrb[0].mxu0
        %v1118 = vadd.f32 0.0, %v1117
        %1119 = vdwg.mxu0
        %1120 = vmatprep.subr.mxu0 %v802
        %1121 = vmatpush1.msra.mxu0 %v801
        %1122 = vmatprep.subr.mxu0 %v810
        %1123 = vmatpush1.msra.mxu0 %v809
        %1124 = vmatprep.subr.mxu0 %v818
        %1125 = vmatpush1.msra.mxu0 %v817
        %1126 = vmatprep.subr.mxu0 %v826
        %1127 = vmatpush1.msra.mxu0 %v825
        %1128 = vmatprep.subr.mxu0 %v834
        %1129 = vmatpush1.msra.mxu0 %v833
        %1130 = vmatprep.subr.mxu0 %v842
        %1131 = vmatpush1.msra.mxu0 %v841
        %1132 = vmatprep.subr.mxu0 %v850
        %1133 = vmatpush1.msra.mxu0 %v849
        %1134 = vmatprep.subr.mxu0 %v858
        %1135 = vmatpush1.msra.mxu0 %v857
        %1136 = vmatprep.subr.mxu0 0.0
        %1137 = vmatpush1.msra.mxu0 0.0
        %1138 = vmatprep.subr.mxu0 0.0
        %1139 = vmatpush1.msra.mxu0 0.0
        %1140 = vmatprep.subr.mxu0 0.0
        %1141 = vmatpush1.msra.mxu0 0.0
        %1142 = vmatprep.subr.mxu0 0.0
        %1143 = vmatpush1.msra.mxu0 0.0
        %1144 = vmatprep.subr.mxu0 0.0
        %1145 = vmatpush1.msra.mxu0 0.0
        %1146 = vmatprep.subr.mxu0 0.0
        %1147 = vmatpush1.msra.mxu0 0.0
        %1148 = vmatprep.subr.mxu0 0.0
        %1149 = vmatpush1.msra.mxu0 0.0
        %1150 = vmatprep.subr.mxu0 0.0
        %1151 = vmatpush1.msra.mxu0 0.0
        %1152 = vmatprep.subr.mxu0 0.0
        %1153 = vmatpush1.msra.mxu0 0.0
        %1154 = vmatprep.subr.mxu0 0.0
        %1155 = vmatpush1.msra.mxu0 0.0
        %1156 = vmatprep.subr.mxu0 0.0
        %1157 = vmatpush1.msra.mxu0 0.0
        %1158 = vmatprep.subr.mxu0 0.0
        %1159 = vmatpush1.msra.mxu0 0.0
        %1160 = vmatprep.subr.mxu0 0.0
        %1161 = vmatpush1.msra.mxu0 0.0
        %1162 = vmatprep.subr.mxu0 0.0
        %1163 = vmatpush1.msra.mxu0 0.0
        %1164 = vmatprep.subr.mxu0 0.0
        %1165 = vmatpush1.msra.mxu0 0.0
        %1166 = vmatprep.subr.mxu0 0.0
        %1167 = vmatpush1.msra.mxu0 0.0
        %1168 = vmatprep.subr.mxu0 0.0
        %1169 = vmatpush1.msra.mxu0 0.0
        %1170 = vmatprep.subr.mxu0 0.0
        %1171 = vmatpush1.msra.mxu0 0.0
        %1172 = vmatprep.subr.mxu0 0.0
        %1173 = vmatpush1.msra.mxu0 0.0
        %1174 = vmatprep.subr.mxu0 0.0
        %1175 = vmatpush1.msra.mxu0 0.0
        %1176 = vmatprep.subr.mxu0 0.0
        %1177 = vmatpush1.msra.mxu0 0.0
        %1178 = vmatprep.subr.mxu0 0.0
        %1179 = vmatpush1.msra.mxu0 0.0
        %1180 = vmatprep.subr.mxu0 0.0
        %1181 = vmatpush1.msra.mxu0 0.0
        %1182 = vmatprep.subr.mxu0 0.0
        %1183 = vmatpush1.msra.mxu0 0.0
        %1184 = vmatprep.mubr.f32.mxu0 0.0
        %1185 = vmatmul.mubr.f32.gmra.mrb[0].mxu0 %v871
        %v1186 = vpop.f32.mrb[0].mxu0
        %v1187 = vadd.f32 0.0, %v1186
        %v1188 = vpop.f32.mrb[0].mxu0
        %v1189 = vadd.f32 0.0, %v1188
        %1190 = vmatprep.mubr.f32.mxu0 0.0
        %1191 = vmatmul.mubr.f32.gmra.mrb[0].mxu0 %v874
        %v1192 = vpop.f32.mrb[0].mxu0
        %v1193 = vadd.f32 0.0, %v1192
        %v1194 = vpop.f32.mrb[0].mxu0
        %v1195 = vadd.f32 0.0, %v1194
        %1196 = vmatprep.mubr.f32.mxu0 0.0
        %1197 = vmatmul.mubr.f32.gmra.mrb[0].mxu0 %v877
        %v1198 = vpop.f32.mrb[0].mxu0
        %v1199 = vadd.f32 0.0, %v1198
        %v1200 = vpop.f32.mrb[0].mxu0
        %v1201 = vadd.f32 0.0, %v1200
        %1202 = vmatprep.mubr.f32.mxu0 0.0
        %1203 = vmatmul.mubr.f32.gmra.mrb[0].mxu0 %v880
        %v1204 = vpop.f32.mrb[0].mxu0
        %v1205 = vadd.f32 0.0, %v1204
        %v1206 = vpop.f32.mrb[0].mxu0
        %v1207 = vadd.f32 0.0, %v1206
        %1208 = vmatprep.mubr.f32.mxu0 0.0
        %1209 = vmatmul.mubr.f32.gmra.mrb[0].mxu0 %v883
        %v1210 = vpop.f32.mrb[0].mxu0
        %v1211 = vadd.f32 0.0, %v1210
        %v1212 = vpop.f32.mrb[0].mxu0
        %v1213 = vadd.f32 0.0, %v1212
        %1214 = vmatprep.mubr.f32.mxu0 0.0
        %1215 = vmatmul.mubr.f32.gmra.mrb[0].mxu0 %v886
        %v1216 = vpop.f32.mrb[0].mxu0
        %v1217 = vadd.f32 0.0, %v1216
        %v1218 = vpop.f32.mrb[0].mxu0
        %v1219 = vadd.f32 0.0, %v1218
        %1220 = vmatprep.mubr.f32.mxu0 0.0
        %1221 = vmatmul.mubr.f32.gmra.mrb[0].mxu0 %v889
        %v1222 = vpop.f32.mrb[0].mxu0
        %v1223 = vadd.f32 0.0, %v1222
        %v1224 = vpop.f32.mrb[0].mxu0
        %v1225 = vadd.f32 0.0, %v1224
        %1226 = vmatprep.mubr.f32.mxu0 0.0
        %1227 = vmatmul.mubr.f32.gmra.mrb[0].mxu0 %v892
        %v1228 = vpop.f32.mrb[0].mxu0
        %v1229 = vadd.f32 0.0, %v1228
        %v1230 = vpop.f32.mrb[0].mxu0
        %v1231 = vadd.f32 0.0, %v1230
        %1232 = vdwg.mxu0
        %1233 = vmatprep.subr.mxu0 %v804
        %1234 = vmatpush1.msra.mxu0 %v803
        %1235 = vmatprep.subr.mxu0 %v812
        %1236 = vmatpush1.msra.mxu0 %v811
        %1237 = vmatprep.subr.mxu0 %v820
        %1238 = vmatpush1.msra.mxu0 %v819
        %1239 = vmatprep.subr.mxu0 %v828
        %1240 = vmatpush1.msra.mxu0 %v827
        %1241 = vmatprep.subr.mxu0 %v836
        %1242 = vmatpush1.msra.mxu0 %v835
        %1243 = vmatprep.subr.mxu0 %v844
        %1244 = vmatpush1.msra.mxu0 %v843
        %1245 = vmatprep.subr.mxu0 %v852
        %1246 = vmatpush1.msra.mxu0 %v851
        %1247 = vmatprep.subr.mxu0 %v860
        %1248 = vmatpush1.msra.mxu0 %v859
        %1249 = vmatprep.subr.mxu0 0.0
        %1250 = vmatpush1.msra.mxu0 0.0
        %1251 = vmatprep.subr.mxu0 0.0
        %1252 = vmatpush1.msra.mxu0 0.0
        %1253 = vmatprep.subr.mxu0 0.0
        %1254 = vmatpush1.msra.mxu0 0.0
        %1255 = vmatprep.subr.mxu0 0.0
        %1256 = vmatpush1.msra.mxu0 0.0
        %1257 = vmatprep.subr.mxu0 0.0
        %1258 = vmatpush1.msra.mxu0 0.0
        %1259 = vmatprep.subr.mxu0 0.0
        %1260 = vmatpush1.msra.mxu0 0.0
        %1261 = vmatprep.subr.mxu0 0.0
        %1262 = vmatpush1.msra.mxu0 0.0
        %1263 = vmatprep.subr.mxu0 0.0
        %1264 = vmatpush1.msra.mxu0 0.0
        %1265 = vmatprep.subr.mxu0 0.0
        %1266 = vmatpush1.msra.mxu0 0.0
        %1267 = vmatprep.subr.mxu0 0.0
        %1268 = vmatpush1.msra.mxu0 0.0
        %1269 = vmatprep.subr.mxu0 0.0
        %1270 = vmatpush1.msra.mxu0 0.0
        %1271 = vmatprep.subr.mxu0 0.0
        %1272 = vmatpush1.msra.mxu0 0.0
        %1273 = vmatprep.subr.mxu0 0.0
        %1274 = vmatpush1.msra.mxu0 0.0
        %1275 = vmatprep.subr.mxu0 0.0
        %1276 = vmatpush1.msra.mxu0 0.0
        %1277 = vmatprep.subr.mxu0 0.0
        %1278 = vmatpush1.msra.mxu0 0.0
        %1279 = vmatprep.subr.mxu0 0.0
        %1280 = vmatpush1.msra.mxu0 0.0
        %1281 = vmatprep.subr.mxu0 0.0
        %1282 = vmatpush1.msra.mxu0 0.0
        %1283 = vmatprep.subr.mxu0 0.0
        %1284 = vmatpush1.msra.mxu0 0.0
        %1285 = vmatprep.subr.mxu0 0.0
        %1286 = vmatpush1.msra.mxu0 0.0
        %1287 = vmatprep.subr.mxu0 0.0
        %1288 = vmatpush1.msra.mxu0 0.0
        %1289 = vmatprep.subr.mxu0 0.0
        %1290 = vmatpush1.msra.mxu0 0.0
        %1291 = vmatprep.subr.mxu0 0.0
        %1292 = vmatpush1.msra.mxu0 0.0
        %1293 = vmatprep.subr.mxu0 0.0
        %1294 = vmatpush1.msra.mxu0 0.0
        %1295 = vmatprep.subr.mxu0 0.0
        %1296 = vmatpush1.msra.mxu0 0.0
        %1297 = vmatprep.mubr.f32.mxu0 0.0
        %1298 = vmatmul.mubr.f32.gmra.mrb[0].mxu0 %v871
        %v1299 = vpop.f32.mrb[0].mxu0
        %v1300 = vadd.f32 0.0, %v1299
        %v1301 = vpop.f32.mrb[0].mxu0
        %v1302 = vadd.f32 0.0, %v1301
        %1303 = vmatprep.mubr.f32.mxu0 0.0
        %1304 = vmatmul.mubr.f32.gmra.mrb[0].mxu0 %v874
        %v1305 = vpop.f32.mrb[0].mxu0
        %v1306 = vadd.f32 0.0, %v1305
        %v1307 = vpop.f32.mrb[0].mxu0
        %v1308 = vadd.f32 0.0, %v1307
        %1309 = vmatprep.mubr.f32.mxu0 0.0
        %1310 = vmatmul.mubr.f32.gmra.mrb[0].mxu0 %v877
        %v1311 = vpop.f32.mrb[0].mxu0
        %v1312 = vadd.f32 0.0, %v1311
        %v1313 = vpop.f32.mrb[0].mxu0
        %v1314 = vadd.f32 0.0, %v1313
        %1315 = vmatprep.mubr.f32.mxu0 0.0
        %1316 = vmatmul.mubr.f32.gmra.mrb[0].mxu0 %v880
        %v1317 = vpop.f32.mrb[0].mxu0
        %v1318 = vadd.f32 0.0, %v1317
        %v1319 = vpop.f32.mrb[0].mxu0
        %v1320 = vadd.f32 0.0, %v1319
        %1321 = vmatprep.mubr.f32.mxu0 0.0
        %1322 = vmatmul.mubr.f32.gmra.mrb[0].mxu0 %v883
        %v1323 = vpop.f32.mrb[0].mxu0
        %v1324 = vadd.f32 0.0, %v1323
        %v1325 = vpop.f32.mrb[0].mxu0
        %v1326 = vadd.f32 0.0, %v1325
        %1327 = vmatprep.mubr.f32.mxu0 0.0
        %1328 = vmatmul.mubr.f32.gmra.mrb[0].mxu0 %v886
        %v1329 = vpop.f32.mrb[0].mxu0
        %v1330 = vadd.f32 0.0, %v1329
        %v1331 = vpop.f32.mrb[0].mxu0
        %v1332 = vadd.f32 0.0, %v1331
        %1333 = vmatprep.mubr.f32.mxu0 0.0
        %1334 = vmatmul.mubr.f32.gmra.mrb[0].mxu0 %v889
        %v1335 = vpop.f32.mrb[0].mxu0
        %v1336 = vadd.f32 0.0, %v1335
        %v1337 = vpop.f32.mrb[0].mxu0
        %v1338 = vadd.f32 0.0, %v1337
        %1339 = vmatprep.mubr.f32.mxu0 0.0
        %1340 = vmatmul.mubr.f32.gmra.mrb[0].mxu0 %v892
        %v1341 = vpop.f32.mrb[0].mxu0
        %v1342 = vadd.f32 0.0, %v1341
        %v1343 = vpop.f32.mrb[0].mxu0
        %v1344 = vadd.f32 0.0, %v1343
        %1345 = vdwg.mxu0
        %v1346 = vmax.f32 %v961, 0.0
        %v1347 = vmax.f32 %v963, 0.0
        %v1348 = vmax.f32 %v1074, 0.0
        %v1349 = vmax.f32 %v1076, 0.0
        %v1350 = vmax.f32 %v1187, 0.0
        %v1351 = vmax.f32 %v1189, 0.0
        %v1352 = vmax.f32 %v1300, 0.0
        %v1353 = vmax.f32 %v1302, 0.0
        %v1354 = vmax.f32 %v967, 0.0
        %v1355 = vmax.f32 %v969, 0.0
        %v1356 = vmax.f32 %v1080, 0.0
        %v1357 = vmax.f32 %v1082, 0.0
        %v1358 = vmax.f32 %v1193, 0.0
        %v1359 = vmax.f32 %v1195, 0.0
        %v1360 = vmax.f32 %v1306, 0.0
        %v1361 = vmax.f32 %v1308, 0.0
        %v1362 = vmax.f32 %v973, 0.0
        %v1363 = vmax.f32 %v975, 0.0
        %v1364 = vmax.f32 %v1086, 0.0
        %v1365 = vmax.f32 %v1088, 0.0
        %v1366 = vmax.f32 %v1199, 0.0
        %v1367 = vmax.f32 %v1201, 0.0
        %v1368 = vmax.f32 %v1312, 0.0
        %v1369 = vmax.f32 %v1314, 0.0
        %v1370 = vmax.f32 %v979, 0.0
        %v1371 = vmax.f32 %v981, 0.0
        %v1372 = vmax.f32 %v1092, 0.0
        %v1373 = vmax.f32 %v1094, 0.0
        %v1374 = vmax.f32 %v1205, 0.0
        %v1375 = vmax.f32 %v1207, 0.0
        %v1376 = vmax.f32 %v1318, 0.0
        %v1377 = vmax.f32 %v1320, 0.0
        %v1378 = vmax.f32 %v985, 0.0
        %v1379 = vmax.f32 %v987, 0.0
        %v1380 = vmax.f32 %v1098, 0.0
        %v1381 = vmax.f32 %v1100, 0.0
        %v1382 = vmax.f32 %v1211, 0.0
        %v1383 = vmax.f32 %v1213, 0.0
        %v1384 = vmax.f32 %v1324, 0.0
        %v1385 = vmax.f32 %v1326, 0.0
        %v1386 = vmax.f32 %v991, 0.0
        %v1387 = vmax.f32 %v993, 0.0
        %v1388 = vmax.f32 %v1104, 0.0
        %v1389 = vmax.f32 %v1106, 0.0
        %v1390 = vmax.f32 %v1217, 0.0
        %v1391 = vmax.f32 %v1219, 0.0
        %v1392 = vmax.f32 %v1330, 0.0
        %v1393 = vmax.f32 %v1332, 0.0
        %v1394 = vmax.f32 %v997, 0.0
        %v1395 = vmax.f32 %v999, 0.0
        %v1396 = vmax.f32 %v1110, 0.0
        %v1397 = vmax.f32 %v1112, 0.0
        %v1398 = vmax.f32 %v1223, 0.0
        %v1399 = vmax.f32 %v1225, 0.0
        %v1400 = vmax.f32 %v1336, 0.0
        %v1401 = vmax.f32 %v1338, 0.0
        %v1402 = vmax.f32 %v1003, 0.0
        %v1403 = vmax.f32 %v1005, 0.0
        %v1404 = vmax.f32 %v1116, 0.0
        %v1405 = vmax.f32 %v1118, 0.0
        %v1406 = vmax.f32 %v1229, 0.0
        %v1407 = vmax.f32 %v1231, 0.0
        %v1408 = vmax.f32 %v1342, 0.0
        %v1409 = vmax.f32 %v1344, 0.0
        %v1410 = vld [vmem:[#allocation5] sm:$0xff]
        %v1411 = vld [vmem:[#allocation5 + $0x8] sm:$0xff]
        %v1412 = vld [vmem:[#allocation5 + $0x10] sm:$0xff]
        %v1413 = vld [vmem:[#allocation5 + $0x18] sm:$0xff]
        %v1414 = vld [vmem:[#allocation5 + $0x20] sm:$0xff]
        %v1415 = vld [vmem:[#allocation5 + $0x28] sm:$0xff]
        %v1416 = vld [vmem:[#allocation5 + $0x30] sm:$0xff]
        %v1417 = vld [vmem:[#allocation5 + $0x38] sm:$0xff]
        %v1419 = vsel %vm869, %v1410, 0
        %v1422 = vsel %vm869, %v1411, 0
        %v1425 = vsel %vm869, %v1412, 0
        %v1428 = vsel %vm869, %v1413, 0
        %v1431 = vsel %vm869, %v1414, 0
        %v1434 = vsel %vm869, %v1415, 0
        %v1437 = vsel %vm869, %v1416, 0
        %v1440 = vsel %vm869, %v1417, 0
        %1442 = vmatprep.subr.mxu0 %v1347
        %1443 = vmatpush1.msra.mxu0 %v1346
        %1444 = vmatprep.subr.mxu0 %v1355
        %1445 = vmatpush1.msra.mxu0 %v1354
        %1446 = vmatprep.subr.mxu0 %v1363
        %1447 = vmatpush1.msra.mxu0 %v1362
        %1448 = vmatprep.subr.mxu0 %v1371
        %1449 = vmatpush1.msra.mxu0 %v1370
        %1450 = vmatprep.subr.mxu0 %v1379
        %1451 = vmatpush1.msra.mxu0 %v1378
        %1452 = vmatprep.subr.mxu0 %v1387
        %1453 = vmatpush1.msra.mxu0 %v1386
        %1454 = vmatprep.subr.mxu0 %v1395
        %1455 = vmatpush1.msra.mxu0 %v1394
        %1456 = vmatprep.subr.mxu0 %v1403
        %1457 = vmatpush1.msra.mxu0 %v1402
        %1458 = vmatprep.subr.mxu0 0.0
        %1459 = vmatpush1.msra.mxu0 0.0
        %1460 = vmatprep.subr.mxu0 0.0
        %1461 = vmatpush1.msra.mxu0 0.0
        %1462 = vmatprep.subr.mxu0 0.0
        %1463 = vmatpush1.msra.mxu0 0.0
        %1464 = vmatprep.subr.mxu0 0.0
        %1465 = vmatpush1.msra.mxu0 0.0
        %1466 = vmatprep.subr.mxu0 0.0
        %1467 = vmatpush1.msra.mxu0 0.0
        %1468 = vmatprep.subr.mxu0 0.0
        %1469 = vmatpush1.msra.mxu0 0.0
        %1470 = vmatprep.subr.mxu0 0.0
        %1471 = vmatpush1.msra.mxu0 0.0
        %1472 = vmatprep.subr.mxu0 0.0
        %1473 = vmatpush1.msra.mxu0 0.0
        %1474 = vmatprep.subr.mxu0 0.0
        %1475 = vmatpush1.msra.mxu0 0.0
        %1476 = vmatprep.subr.mxu0 0.0
        %1477 = vmatpush1.msra.mxu0 0.0
        %1478 = vmatprep.subr.mxu0 0.0
        %1479 = vmatpush1.msra.mxu0 0.0
        %1480 = vmatprep.subr.mxu0 0.0
        %1481 = vmatpush1.msra.mxu0 0.0
        %1482 = vmatprep.subr.mxu0 0.0
        %1483 = vmatpush1.msra.mxu0 0.0
        %1484 = vmatprep.subr.mxu0 0.0
        %1485 = vmatpush1.msra.mxu0 0.0
        %1486 = vmatprep.subr.mxu0 0.0
        %1487 = vmatpush1.msra.mxu0 0.0
        %1488 = vmatprep.subr.mxu0 0.0
        %1489 = vmatpush1.msra.mxu0 0.0
        %1490 = vmatprep.subr.mxu0 0.0
        %1491 = vmatpush1.msra.mxu0 0.0
        %1492 = vmatprep.subr.mxu0 0.0
        %1493 = vmatpush1.msra.mxu0 0.0
        %1494 = vmatprep.subr.mxu0 0.0
        %1495 = vmatpush1.msra.mxu0 0.0
        %1496 = vmatprep.subr.mxu0 0.0
        %1497 = vmatpush1.msra.mxu0 0.0
        %1498 = vmatprep.subr.mxu0 0.0
        %1499 = vmatpush1.msra.mxu0 0.0
        %1500 = vmatprep.subr.mxu0 0.0
        %1501 = vmatpush1.msra.mxu0 0.0
        %1502 = vmatprep.subr.mxu0 0.0
        %1503 = vmatpush1.msra.mxu0 0.0
        %1504 = vmatprep.subr.mxu0 0.0
        %1505 = vmatpush1.msra.mxu0 0.0
        %1506 = vmatprep.mubr.f32.mxu0 0.0
        %1507 = vmatmul.mubr.f32.gmra.mrb[0].mxu0 %v1419
        %v1508 = vpop.f32.mrb[0].mxu0
        %v1509 = vadd.f32 0.0, %v1508
        %v1510 = vpop.f32.mrb[0].mxu0
        %v1511 = vadd.f32 0.0, %v1510
        %1512 = vmatprep.mubr.f32.mxu0 0.0
        %1513 = vmatmul.mubr.f32.gmra.mrb[0].mxu0 %v1422
        %v1514 = vpop.f32.mrb[0].mxu0
        %v1515 = vadd.f32 0.0, %v1514
        %v1516 = vpop.f32.mrb[0].mxu0
        %v1517 = vadd.f32 0.0, %v1516
        %1518 = vmatprep.mubr.f32.mxu0 0.0
        %1519 = vmatmul.mubr.f32.gmra.mrb[0].mxu0 %v1425
        %v1520 = vpop.f32.mrb[0].mxu0
        %v1521 = vadd.f32 0.0, %v1520
        %v1522 = vpop.f32.mrb[0].mxu0
        %v1523 = vadd.f32 0.0, %v1522
        %1524 = vmatprep.mubr.f32.mxu0 0.0
        %1525 = vmatmul.mubr.f32.gmra.mrb[0].mxu0 %v1428
        %v1526 = vpop.f32.mrb[0].mxu0
        %v1527 = vadd.f32 0.0, %v1526
        %v1528 = vpop.f32.mrb[0].mxu0
        %v1529 = vadd.f32 0.0, %v1528
        %1530 = vmatprep.mubr.f32.mxu0 0.0
        %1531 = vmatmul.mubr.f32.gmra.mrb[0].mxu0 %v1431
        %v1532 = vpop.f32.mrb[0].mxu0
        %v1533 = vadd.f32 0.0, %v1532
        %v1534 = vpop.f32.mrb[0].mxu0
        %v1535 = vadd.f32 0.0, %v1534
        %1536 = vmatprep.mubr.f32.mxu0 0.0
        %1537 = vmatmul.mubr.f32.gmra.mrb[0].mxu0 %v1434
        %v1538 = vpop.f32.mrb[0].mxu0
        %v1539 = vadd.f32 0.0, %v1538
        %v1540 = vpop.f32.mrb[0].mxu0
        %v1541 = vadd.f32 0.0, %v1540
        %1542 = vmatprep.mubr.f32.mxu0 0.0
        %1543 = vmatmul.mubr.f32.gmra.mrb[0].mxu0 %v1437
        %v1544 = vpop.f32.mrb[0].mxu0
        %v1545 = vadd.f32 0.0, %v1544
        %v1546 = vpop.f32.mrb[0].mxu0
        %v1547 = vadd.f32 0.0, %v1546
        %1548 = vmatprep.mubr.f32.mxu0 0.0
        %1549 = vmatmul.mubr.f32.gmra.mrb[0].mxu0 %v1440
        %v1550 = vpop.f32.mrb[0].mxu0
        %v1551 = vadd.f32 0.0, %v1550
        %v1552 = vpop.f32.mrb[0].mxu0
        %v1553 = vadd.f32 0.0, %v1552
        %1554 = vdwg.mxu0
        %1555 = vmatprep.subr.mxu0 %v1349
        %1556 = vmatpush1.msra.mxu0 %v1348
        %1557 = vmatprep.subr.mxu0 %v1357
        %1558 = vmatpush1.msra.mxu0 %v1356
        %1559 = vmatprep.subr.mxu0 %v1365
        %1560 = vmatpush1.msra.mxu0 %v1364
        %1561 = vmatprep.subr.mxu0 %v1373
        %1562 = vmatpush1.msra.mxu0 %v1372
        %1563 = vmatprep.subr.mxu0 %v1381
        %1564 = vmatpush1.msra.mxu0 %v1380
        %1565 = vmatprep.subr.mxu0 %v1389
        %1566 = vmatpush1.msra.mxu0 %v1388
        %1567 = vmatprep.subr.mxu0 %v1397
        %1568 = vmatpush1.msra.mxu0 %v1396
        %1569 = vmatprep.subr.mxu0 %v1405
        %1570 = vmatpush1.msra.mxu0 %v1404
        %1571 = vmatprep.subr.mxu0 0.0
        %1572 = vmatpush1.msra.mxu0 0.0
        %1573 = vmatprep.subr.mxu0 0.0
        %1574 = vmatpush1.msra.mxu0 0.0
        %1575 = vmatprep.subr.mxu0 0.0
        %1576 = vmatpush1.msra.mxu0 0.0
        %1577 = vmatprep.subr.mxu0 0.0
        %1578 = vmatpush1.msra.mxu0 0.0
        %1579 = vmatprep.subr.mxu0 0.0
        %1580 = vmatpush1.msra.mxu0 0.0
        %1581 = vmatprep.subr.mxu0 0.0
        %1582 = vmatpush1.msra.mxu0 0.0
        %1583 = vmatprep.subr.mxu0 0.0
        %1584 = vmatpush1.msra.mxu0 0.0
        %1585 = vmatprep.subr.mxu0 0.0
        %1586 = vmatpush1.msra.mxu0 0.0
        %1587 = vmatprep.subr.mxu0 0.0
        %1588 = vmatpush1.msra.mxu0 0.0
        %1589 = vmatprep.subr.mxu0 0.0
        %1590 = vmatpush1.msra.mxu0 0.0
        %1591 = vmatprep.subr.mxu0 0.0
        %1592 = vmatpush1.msra.mxu0 0.0
        %1593 = vmatprep.subr.mxu0 0.0
        %1594 = vmatpush1.msra.mxu0 0.0
        %1595 = vmatprep.subr.mxu0 0.0
        %1596 = vmatpush1.msra.mxu0 0.0
        %1597 = vmatprep.subr.mxu0 0.0
        %1598 = vmatpush1.msra.mxu0 0.0
        %1599 = vmatprep.subr.mxu0 0.0
        %1600 = vmatpush1.msra.mxu0 0.0
        %1601 = vmatprep.subr.mxu0 0.0
        %1602 = vmatpush1.msra.mxu0 0.0
        %1603 = vmatprep.subr.mxu0 0.0
        %1604 = vmatpush1.msra.mxu0 0.0
        %1605 = vmatprep.subr.mxu0 0.0
        %1606 = vmatpush1.msra.mxu0 0.0
        %1607 = vmatprep.subr.mxu0 0.0
        %1608 = vmatpush1.msra.mxu0 0.0
        %1609 = vmatprep.subr.mxu0 0.0
        %1610 = vmatpush1.msra.mxu0 0.0
        %1611 = vmatprep.subr.mxu0 0.0
        %1612 = vmatpush1.msra.mxu0 0.0
        %1613 = vmatprep.subr.mxu0 0.0
        %1614 = vmatpush1.msra.mxu0 0.0
        %1615 = vmatprep.subr.mxu0 0.0
        %1616 = vmatpush1.msra.mxu0 0.0
        %1617 = vmatprep.subr.mxu0 0.0
        %1618 = vmatpush1.msra.mxu0 0.0
        %1619 = vmatprep.mubr.f32.mxu0 0.0
        %1620 = vmatmul.mubr.f32.gmra.mrb[0].mxu0 %v1419
        %v1621 = vpop.f32.mrb[0].mxu0
        %v1622 = vadd.f32 0.0, %v1621
        %v1623 = vpop.f32.mrb[0].mxu0
        %v1624 = vadd.f32 0.0, %v1623
        %1625 = vmatprep.mubr.f32.mxu0 0.0
        %1626 = vmatmul.mubr.f32.gmra.mrb[0].mxu0 %v1422
        %v1627 = vpop.f32.mrb[0].mxu0
        %v1628 = vadd.f32 0.0, %v1627
        %v1629 = vpop.f32.mrb[0].mxu0
        %v1630 = vadd.f32 0.0, %v1629
        %1631 = vmatprep.mubr.f32.mxu0 0.0
        %1632 = vmatmul.mubr.f32.gmra.mrb[0].mxu0 %v1425
        %v1633 = vpop.f32.mrb[0].mxu0
        %v1634 = vadd.f32 0.0, %v1633
        %v1635 = vpop.f32.mrb[0].mxu0
        %v1636 = vadd.f32 0.0, %v1635
        %1637 = vmatprep.mubr.f32.mxu0 0.0
        %1638 = vmatmul.mubr.f32.gmra.mrb[0].mxu0 %v1428
        %v1639 = vpop.f32.mrb[0].mxu0
        %v1640 = vadd.f32 0.0, %v1639
        %v1641 = vpop.f32.mrb[0].mxu0
        %v1642 = vadd.f32 0.0, %v1641
        %1643 = vmatprep.mubr.f32.mxu0 0.0
        %1644 = vmatmul.mubr.f32.gmra.mrb[0].mxu0 %v1431
        %v1645 = vpop.f32.mrb[0].mxu0
        %v1646 = vadd.f32 0.0, %v1645
        %v1647 = vpop.f32.mrb[0].mxu0
        %v1648 = vadd.f32 0.0, %v1647
        %1649 = vmatprep.mubr.f32.mxu0 0.0
        %1650 = vmatmul.mubr.f32.gmra.mrb[0].mxu0 %v1434
        %v1651 = vpop.f32.mrb[0].mxu0
        %v1652 = vadd.f32 0.0, %v1651
        %v1653 = vpop.f32.mrb[0].mxu0
        %v1654 = vadd.f32 0.0, %v1653
        %1655 = vmatprep.mubr.f32.mxu0 0.0
        %1656 = vmatmul.mubr.f32.gmra.mrb[0].mxu0 %v1437
        %v1657 = vpop.f32.mrb[0].mxu0
        %v1658 = vadd.f32 0.0, %v1657
        %v1659 = vpop.f32.mrb[0].mxu0
        %v1660 = vadd.f32 0.0, %v1659
        %1661 = vmatprep.mubr.f32.mxu0 0.0
        %1662 = vmatmul.mubr.f32.gmra.mrb[0].mxu0 %v1440
        %v1663 = vpop.f32.mrb[0].mxu0
        %v1664 = vadd.f32 0.0, %v1663
        %v1665 = vpop.f32.mrb[0].mxu0
        %v1666 = vadd.f32 0.0, %v1665
        %1667 = vdwg.mxu0
        %1668 = vmatprep.subr.mxu0 %v1351
        %1669 = vmatpush1.msra.mxu0 %v1350
        %1670 = vmatprep.subr.mxu0 %v1359
        %1671 = vmatpush1.msra.mxu0 %v1358
        %1672 = vmatprep.subr.mxu0 %v1367
        %1673 = vmatpush1.msra.mxu0 %v1366
        %1674 = vmatprep.subr.mxu0 %v1375
        %1675 = vmatpush1.msra.mxu0 %v1374
        %1676 = vmatprep.subr.mxu0 %v1383
        %1677 = vmatpush1.msra.mxu0 %v1382
        %1678 = vmatprep.subr.mxu0 %v1391
        %1679 = vmatpush1.msra.mxu0 %v1390
        %1680 = vmatprep.subr.mxu0 %v1399
        %1681 = vmatpush1.msra.mxu0 %v1398
        %1682 = vmatprep.subr.mxu0 %v1407
        %1683 = vmatpush1.msra.mxu0 %v1406
        %1684 = vmatprep.subr.mxu0 0.0
        %1685 = vmatpush1.msra.mxu0 0.0
        %1686 = vmatprep.subr.mxu0 0.0
        %1687 = vmatpush1.msra.mxu0 0.0
        %1688 = vmatprep.subr.mxu0 0.0
        %1689 = vmatpush1.msra.mxu0 0.0
        %1690 = vmatprep.subr.mxu0 0.0
        %1691 = vmatpush1.msra.mxu0 0.0
        %1692 = vmatprep.subr.mxu0 0.0
        %1693 = vmatpush1.msra.mxu0 0.0
        %1694 = vmatprep.subr.mxu0 0.0
        %1695 = vmatpush1.msra.mxu0 0.0
        %1696 = vmatprep.subr.mxu0 0.0
        %1697 = vmatpush1.msra.mxu0 0.0
        %1698 = vmatprep.subr.mxu0 0.0
        %1699 = vmatpush1.msra.mxu0 0.0
        %1700 = vmatprep.subr.mxu0 0.0
        %1701 = vmatpush1.msra.mxu0 0.0
        %1702 = vmatprep.subr.mxu0 0.0
        %1703 = vmatpush1.msra.mxu0 0.0
        %1704 = vmatprep.subr.mxu0 0.0
        %1705 = vmatpush1.msra.mxu0 0.0
        %1706 = vmatprep.subr.mxu0 0.0
        %1707 = vmatpush1.msra.mxu0 0.0
        %1708 = vmatprep.subr.mxu0 0.0
        %1709 = vmatpush1.msra.mxu0 0.0
        %1710 = vmatprep.subr.mxu0 0.0
        %1711 = vmatpush1.msra.mxu0 0.0
        %1712 = vmatprep.subr.mxu0 0.0
        %1713 = vmatpush1.msra.mxu0 0.0
        %1714 = vmatprep.subr.mxu0 0.0
        %1715 = vmatpush1.msra.mxu0 0.0
        %1716 = vmatprep.subr.mxu0 0.0
        %1717 = vmatpush1.msra.mxu0 0.0
        %1718 = vmatprep.subr.mxu0 0.0
        %1719 = vmatpush1.msra.mxu0 0.0
        %1720 = vmatprep.subr.mxu0 0.0
        %1721 = vmatpush1.msra.mxu0 0.0
        %1722 = vmatprep.subr.mxu0 0.0
        %1723 = vmatpush1.msra.mxu0 0.0
        %1724 = vmatprep.subr.mxu0 0.0
        %1725 = vmatpush1.msra.mxu0 0.0
        %1726 = vmatprep.subr.mxu0 0.0
        %1727 = vmatpush1.msra.mxu0 0.0
        %1728 = vmatprep.subr.mxu0 0.0
        %1729 = vmatpush1.msra.mxu0 0.0
        %1730 = vmatprep.subr.mxu0 0.0
        %1731 = vmatpush1.msra.mxu0 0.0
        %1732 = vmatprep.mubr.f32.mxu0 0.0
        %1733 = vmatmul.mubr.f32.gmra.mrb[0].mxu0 %v1419
        %v1734 = vpop.f32.mrb[0].mxu0
        %v1735 = vadd.f32 0.0, %v1734
        %v1736 = vpop.f32.mrb[0].mxu0
        %v1737 = vadd.f32 0.0, %v1736
        %1738 = vmatprep.mubr.f32.mxu0 0.0
        %1739 = vmatmul.mubr.f32.gmra.mrb[0].mxu0 %v1422
        %v1740 = vpop.f32.mrb[0].mxu0
        %v1741 = vadd.f32 0.0, %v1740
        %v1742 = vpop.f32.mrb[0].mxu0
        %v1743 = vadd.f32 0.0, %v1742
        %1744 = vmatprep.mubr.f32.mxu0 0.0
        %1745 = vmatmul.mubr.f32.gmra.mrb[0].mxu0 %v1425
        %v1746 = vpop.f32.mrb[0].mxu0
        %v1747 = vadd.f32 0.0, %v1746
        %v1748 = vpop.f32.mrb[0].mxu0
        %v1749 = vadd.f32 0.0, %v1748
        %1750 = vmatprep.mubr.f32.mxu0 0.0
        %1751 = vmatmul.mubr.f32.gmra.mrb[0].mxu0 %v1428
        %v1752 = vpop.f32.mrb[0].mxu0
        %v1753 = vadd.f32 0.0, %v1752
        %v1754 = vpop.f32.mrb[0].mxu0
        %v1755 = vadd.f32 0.0, %v1754
        %1756 = vmatprep.mubr.f32.mxu0 0.0
        %1757 = vmatmul.mubr.f32.gmra.mrb[0].mxu0 %v1431
        %v1758 = vpop.f32.mrb[0].mxu0
        %v1759 = vadd.f32 0.0, %v1758
        %v1760 = vpop.f32.mrb[0].mxu0
        %v1761 = vadd.f32 0.0, %v1760
        %1762 = vmatprep.mubr.f32.mxu0 0.0
        %1763 = vmatmul.mubr.f32.gmra.mrb[0].mxu0 %v1434
        %v1764 = vpop.f32.mrb[0].mxu0
        %v1765 = vadd.f32 0.0, %v1764
        %v1766 = vpop.f32.mrb[0].mxu0
        %v1767 = vadd.f32 0.0, %v1766
        %1768 = vmatprep.mubr.f32.mxu0 0.0
        %1769 = vmatmul.mubr.f32.gmra.mrb[0].mxu0 %v1437
        %v1770 = vpop.f32.mrb[0].mxu0
        %v1771 = vadd.f32 0.0, %v1770
        %v1772 = vpop.f32.mrb[0].mxu0
        %v1773 = vadd.f32 0.0, %v1772
        %1774 = vmatprep.mubr.f32.mxu0 0.0
        %1775 = vmatmul.mubr.f32.gmra.mrb[0].mxu0 %v1440
        %v1776 = vpop.f32.mrb[0].mxu0
        %v1777 = vadd.f32 0.0, %v1776
        %v1778 = vpop.f32.mrb[0].mxu0
        %v1779 = vadd.f32 0.0, %v1778
        %1780 = vdwg.mxu0
        %1781 = vmatprep.subr.mxu0 %v1353
        %1782 = vmatpush1.msra.mxu0 %v1352
        %1783 = vmatprep.subr.mxu0 %v1361
        %1784 = vmatpush1.msra.mxu0 %v1360
        %1785 = vmatprep.subr.mxu0 %v1369
        %1786 = vmatpush1.msra.mxu0 %v1368
        %1787 = vmatprep.subr.mxu0 %v1377
        %1788 = vmatpush1.msra.mxu0 %v1376
        %1789 = vmatprep.subr.mxu0 %v1385
        %1790 = vmatpush1.msra.mxu0 %v1384
        %1791 = vmatprep.subr.mxu0 %v1393
        %1792 = vmatpush1.msra.mxu0 %v1392
        %1793 = vmatprep.subr.mxu0 %v1401
        %1794 = vmatpush1.msra.mxu0 %v1400
        %1795 = vmatprep.subr.mxu0 %v1409
        %1796 = vmatpush1.msra.mxu0 %v1408
        %1797 = vmatprep.subr.mxu0 0.0
        %1798 = vmatpush1.msra.mxu0 0.0
        %1799 = vmatprep.subr.mxu0 0.0
        %1800 = vmatpush1.msra.mxu0 0.0
        %1801 = vmatprep.subr.mxu0 0.0
        %1802 = vmatpush1.msra.mxu0 0.0
        %1803 = vmatprep.subr.mxu0 0.0
        %1804 = vmatpush1.msra.mxu0 0.0
        %1805 = vmatprep.subr.mxu0 0.0
        %1806 = vmatpush1.msra.mxu0 0.0
        %1807 = vmatprep.subr.mxu0 0.0
        %1808 = vmatpush1.msra.mxu0 0.0
        %1809 = vmatprep.subr.mxu0 0.0
        %1810 = vmatpush1.msra.mxu0 0.0
        %1811 = vmatprep.subr.mxu0 0.0
        %1812 = vmatpush1.msra.mxu0 0.0
        %1813 = vmatprep.subr.mxu0 0.0
        %1814 = vmatpush1.msra.mxu0 0.0
        %1815 = vmatprep.subr.mxu0 0.0
        %1816 = vmatpush1.msra.mxu0 0.0
        %1817 = vmatprep.subr.mxu0 0.0
        %1818 = vmatpush1.msra.mxu0 0.0
        %1819 = vmatprep.subr.mxu0 0.0
        %1820 = vmatpush1.msra.mxu0 0.0
        %1821 = vmatprep.subr.mxu0 0.0
        %1822 = vmatpush1.msra.mxu0 0.0
        %1823 = vmatprep.subr.mxu0 0.0
        %1824 = vmatpush1.msra.mxu0 0.0
        %1825 = vmatprep.subr.mxu0 0.0
        %1826 = vmatpush1.msra.mxu0 0.0
        %1827 = vmatprep.subr.mxu0 0.0
        %1828 = vmatpush1.msra.mxu0 0.0
        %1829 = vmatprep.subr.mxu0 0.0
        %1830 = vmatpush1.msra.mxu0 0.0
        %1831 = vmatprep.subr.mxu0 0.0
        %1832 = vmatpush1.msra.mxu0 0.0
        %1833 = vmatprep.subr.mxu0 0.0
        %1834 = vmatpush1.msra.mxu0 0.0
        %1835 = vmatprep.subr.mxu0 0.0
        %1836 = vmatpush1.msra.mxu0 0.0
        %1837 = vmatprep.subr.mxu0 0.0
        %1838 = vmatpush1.msra.mxu0 0.0
        %1839 = vmatprep.subr.mxu0 0.0
        %1840 = vmatpush1.msra.mxu0 0.0
        %1841 = vmatprep.subr.mxu0 0.0
        %1842 = vmatpush1.msra.mxu0 0.0
        %1843 = vmatprep.subr.mxu0 0.0
        %1844 = vmatpush1.msra.mxu0 0.0
        %1845 = vmatprep.mubr.f32.mxu0 0.0
        %1846 = vmatmul.mubr.f32.gmra.mrb[0].mxu0 %v1419
        %v1847 = vpop.f32.mrb[0].mxu0
        %v1848 = vadd.f32 0.0, %v1847
        %v1849 = vpop.f32.mrb[0].mxu0
        %v1850 = vadd.f32 0.0, %v1849
        %1851 = vmatprep.mubr.f32.mxu0 0.0
        %1852 = vmatmul.mubr.f32.gmra.mrb[0].mxu0 %v1422
        %v1853 = vpop.f32.mrb[0].mxu0
        %v1854 = vadd.f32 0.0, %v1853
        %v1855 = vpop.f32.mrb[0].mxu0
        %v1856 = vadd.f32 0.0, %v1855
        %1857 = vmatprep.mubr.f32.mxu0 0.0
        %1858 = vmatmul.mubr.f32.gmra.mrb[0].mxu0 %v1425
        %v1859 = vpop.f32.mrb[0].mxu0
        %v1860 = vadd.f32 0.0, %v1859
        %v1861 = vpop.f32.mrb[0].mxu0
        %v1862 = vadd.f32 0.0, %v1861
        %1863 = vmatprep.mubr.f32.mxu0 0.0
        %1864 = vmatmul.mubr.f32.gmra.mrb[0].mxu0 %v1428
        %v1865 = vpop.f32.mrb[0].mxu0
        %v1866 = vadd.f32 0.0, %v1865
        %v1867 = vpop.f32.mrb[0].mxu0
        %v1868 = vadd.f32 0.0, %v1867
        %1869 = vmatprep.mubr.f32.mxu0 0.0
        %1870 = vmatmul.mubr.f32.gmra.mrb[0].mxu0 %v1431
        %v1871 = vpop.f32.mrb[0].mxu0
        %v1872 = vadd.f32 0.0, %v1871
        %v1873 = vpop.f32.mrb[0].mxu0
        %v1874 = vadd.f32 0.0, %v1873
        %1875 = vmatprep.mubr.f32.mxu0 0.0
        %1876 = vmatmul.mubr.f32.gmra.mrb[0].mxu0 %v1434
        %v1877 = vpop.f32.mrb[0].mxu0
        %v1878 = vadd.f32 0.0, %v1877
        %v1879 = vpop.f32.mrb[0].mxu0
        %v1880 = vadd.f32 0.0, %v1879
        %1881 = vmatprep.mubr.f32.mxu0 0.0
        %1882 = vmatmul.mubr.f32.gmra.mrb[0].mxu0 %v1437
        %v1883 = vpop.f32.mrb[0].mxu0
        %v1884 = vadd.f32 0.0, %v1883
        %v1885 = vpop.f32.mrb[0].mxu0
        %v1886 = vadd.f32 0.0, %v1885
        %1887 = vmatprep.mubr.f32.mxu0 0.0
        %1888 = vmatmul.mubr.f32.gmra.mrb[0].mxu0 %v1440
        %v1889 = vpop.f32.mrb[0].mxu0
        %v1890 = vadd.f32 0.0, %v1889
        %v1891 = vpop.f32.mrb[0].mxu0
        %v1892 = vadd.f32 0.0, %v1891
        %1893 = vdwg.mxu0
        %v1894 = vmax.f32 %v1509, 0.0
        %v1895 = vmax.f32 %v1511, 0.0
        %v1896 = vmax.f32 %v1622, 0.0
        %v1897 = vmax.f32 %v1624, 0.0
        %v1898 = vmax.f32 %v1735, 0.0
        %v1899 = vmax.f32 %v1737, 0.0
        %v1900 = vmax.f32 %v1848, 0.0
        %v1901 = vmax.f32 %v1850, 0.0
        %v1902 = vmax.f32 %v1515, 0.0
        %v1903 = vmax.f32 %v1517, 0.0
        %v1904 = vmax.f32 %v1628, 0.0
        %v1905 = vmax.f32 %v1630, 0.0
        %v1906 = vmax.f32 %v1741, 0.0
        %v1907 = vmax.f32 %v1743, 0.0
        %v1908 = vmax.f32 %v1854, 0.0
        %v1909 = vmax.f32 %v1856, 0.0
        %v1910 = vmax.f32 %v1521, 0.0
        %v1911 = vmax.f32 %v1523, 0.0
        %v1912 = vmax.f32 %v1634, 0.0
        %v1913 = vmax.f32 %v1636, 0.0
        %v1914 = vmax.f32 %v1747, 0.0
        %v1915 = vmax.f32 %v1749, 0.0
        %v1916 = vmax.f32 %v1860, 0.0
        %v1917 = vmax.f32 %v1862, 0.0
        %v1918 = vmax.f32 %v1527, 0.0
        %v1919 = vmax.f32 %v1529, 0.0
        %v1920 = vmax.f32 %v1640, 0.0
        %v1921 = vmax.f32 %v1642, 0.0
        %v1922 = vmax.f32 %v1753, 0.0
        %v1923 = vmax.f32 %v1755, 0.0
        %v1924 = vmax.f32 %v1866, 0.0
        %v1925 = vmax.f32 %v1868, 0.0
        %v1926 = vmax.f32 %v1533, 0.0
        %v1927 = vmax.f32 %v1535, 0.0
        %v1928 = vmax.f32 %v1646, 0.0
        %v1929 = vmax.f32 %v1648, 0.0
        %v1930 = vmax.f32 %v1759, 0.0
        %v1931 = vmax.f32 %v1761, 0.0
        %v1932 = vmax.f32 %v1872, 0.0
        %v1933 = vmax.f32 %v1874, 0.0
        %v1934 = vmax.f32 %v1539, 0.0
        %v1935 = vmax.f32 %v1541, 0.0
        %v1936 = vmax.f32 %v1652, 0.0
        %v1937 = vmax.f32 %v1654, 0.0
        %v1938 = vmax.f32 %v1765, 0.0
        %v1939 = vmax.f32 %v1767, 0.0
        %v1940 = vmax.f32 %v1878, 0.0
        %v1941 = vmax.f32 %v1880, 0.0
        %v1942 = vmax.f32 %v1545, 0.0
        %v1943 = vmax.f32 %v1547, 0.0
        %v1944 = vmax.f32 %v1658, 0.0
        %v1945 = vmax.f32 %v1660, 0.0
        %v1946 = vmax.f32 %v1771, 0.0
        %v1947 = vmax.f32 %v1773, 0.0
        %v1948 = vmax.f32 %v1884, 0.0
        %v1949 = vmax.f32 %v1886, 0.0
        %v1950 = vmax.f32 %v1551, 0.0
        %v1951 = vmax.f32 %v1553, 0.0
        %v1952 = vmax.f32 %v1664, 0.0
        %v1953 = vmax.f32 %v1666, 0.0
        %v1954 = vmax.f32 %v1777, 0.0
        %v1955 = vmax.f32 %v1779, 0.0
        %v1956 = vmax.f32 %v1890, 0.0
        %v1957 = vmax.f32 %v1892, 0.0
        %v1958 = vld [vmem:[%s4] sm:$0x7]
        %v1959 = vld [vmem:[%s5] sm:$0x7]
        %1961 = vset.pattern.permute.xlu0 0
        %1962 = vperm.xlu0 %1961, %v1959
        %v1963 = vpop.permute.xlu0 %1962
        %v1966 = vsel %vm869, %v1958, 0
        %1968 = vmatprep.subr.mxu0 %v1895
        %1969 = vmatpush1.msra.mxu0 %v1894
        %1970 = vmatprep.subr.mxu0 %v1903
        %1971 = vmatpush1.msra.mxu0 %v1902
        %1972 = vmatprep.subr.mxu0 %v1911
        %1973 = vmatpush1.msra.mxu0 %v1910
        %1974 = vmatprep.subr.mxu0 %v1919
        %1975 = vmatpush1.msra.mxu0 %v1918
        %1976 = vmatprep.subr.mxu0 %v1927
        %1977 = vmatpush1.msra.mxu0 %v1926
        %1978 = vmatprep.subr.mxu0 %v1935
        %1979 = vmatpush1.msra.mxu0 %v1934
        %1980 = vmatprep.subr.mxu0 %v1943
        %1981 = vmatpush1.msra.mxu0 %v1942
        %1982 = vmatprep.subr.mxu0 %v1951
        %1983 = vmatpush1.msra.mxu0 %v1950
        %1984 = vmatprep.subr.mxu0 0.0
        %1985 = vmatpush1.msra.mxu0 0.0
        %1986 = vmatprep.subr.mxu0 0.0
        %1987 = vmatpush1.msra.mxu0 0.0
        %1988 = vmatprep.subr.mxu0 0.0
        %1989 = vmatpush1.msra.mxu0 0.0
        %1990 = vmatprep.subr.mxu0 0.0
        %1991 = vmatpush1.msra.mxu0 0.0
        %1992 = vmatprep.subr.mxu0 0.0
        %1993 = vmatpush1.msra.mxu0 0.0
        %1994 = vmatprep.subr.mxu0 0.0
        %1995 = vmatpush1.msra.mxu0 0.0
        %1996 = vmatprep.subr.mxu0 0.0
        %1997 = vmatpush1.msra.mxu0 0.0
        %1998 = vmatprep.subr.mxu0 0.0
        %1999 = vmatpush1.msra.mxu0 0.0
        %2000 = vmatprep.subr.mxu0 0.0
        %2001 = vmatpush1.msra.mxu0 0.0
        %2002 = vmatprep.subr.mxu0 0.0
        %2003 = vmatpush1.msra.mxu0 0.0
        %2004 = vmatprep.subr.mxu0 0.0
        %2005 = vmatpush1.msra.mxu0 0.0
        %2006 = vmatprep.subr.mxu0 0.0
        %2007 = vmatpush1.msra.mxu0 0.0
        %2008 = vmatprep.subr.mxu0 0.0
        %2009 = vmatpush1.msra.mxu0 0.0
        %2010 = vmatprep.subr.mxu0 0.0
        %2011 = vmatpush1.msra.mxu0 0.0
        %2012 = vmatprep.subr.mxu0 0.0
        %2013 = vmatpush1.msra.mxu0 0.0
        %2014 = vmatprep.subr.mxu0 0.0
        %2015 = vmatpush1.msra.mxu0 0.0
        %2016 = vmatprep.subr.mxu0 0.0
        %2017 = vmatpush1.msra.mxu0 0.0
        %2018 = vmatprep.subr.mxu0 0.0
        %2019 = vmatpush1.msra.mxu0 0.0
        %2020 = vmatprep.subr.mxu0 0.0
        %2021 = vmatpush1.msra.mxu0 0.0
        %2022 = vmatprep.subr.mxu0 0.0
        %2023 = vmatpush1.msra.mxu0 0.0
        %2024 = vmatprep.subr.mxu0 0.0
        %2025 = vmatpush1.msra.mxu0 0.0
        %2026 = vmatprep.subr.mxu0 0.0
        %2027 = vmatpush1.msra.mxu0 0.0
        %2028 = vmatprep.subr.mxu0 0.0
        %2029 = vmatpush1.msra.mxu0 0.0
        %2030 = vmatprep.subr.mxu0 0.0
        %2031 = vmatpush1.msra.mxu0 0.0
        %2032 = vmatprep.mubr.f32.mxu0 0.0
        %2033 = vmatmul.mubr.f32.gmra.mrb[0].mxu0 %v1966
        %v2034 = vpop.f32.mrb[0].mxu0
        %v2035 = vadd.f32 %v1963, %v2034
        %v2036 = vpop.f32.mrb[0].mxu0
        %v2037 = vadd.f32 %v1963, %v2036
        %2038 = vdwg.mxu0
        %2039 = vmatprep.subr.mxu0 %v1897
        %2040 = vmatpush1.msra.mxu0 %v1896
        %2041 = vmatprep.subr.mxu0 %v1905
        %2042 = vmatpush1.msra.mxu0 %v1904
        %2043 = vmatprep.subr.mxu0 %v1913
        %2044 = vmatpush1.msra.mxu0 %v1912
        %2045 = vmatprep.subr.mxu0 %v1921
        %2046 = vmatpush1.msra.mxu0 %v1920
        %2047 = vmatprep.subr.mxu0 %v1929
        %2048 = vmatpush1.msra.mxu0 %v1928
        %2049 = vmatprep.subr.mxu0 %v1937
        %2050 = vmatpush1.msra.mxu0 %v1936
        %2051 = vmatprep.subr.mxu0 %v1945
        %2052 = vmatpush1.msra.mxu0 %v1944
        %2053 = vmatprep.subr.mxu0 %v1953
        %2054 = vmatpush1.msra.mxu0 %v1952
        %2055 = vmatprep.subr.mxu0 0.0
        %2056 = vmatpush1.msra.mxu0 0.0
        %2057 = vmatprep.subr.mxu0 0.0
        %2058 = vmatpush1.msra.mxu0 0.0
        %2059 = vmatprep.subr.mxu0 0.0
        %2060 = vmatpush1.msra.mxu0 0.0
        %2061 = vmatprep.subr.mxu0 0.0
        %2062 = vmatpush1.msra.mxu0 0.0
        %2063 = vmatprep.subr.mxu0 0.0
        %2064 = vmatpush1.msra.mxu0 0.0
        %2065 = vmatprep.subr.mxu0 0.0
        %2066 = vmatpush1.msra.mxu0 0.0
        %2067 = vmatprep.subr.mxu0 0.0
        %2068 = vmatpush1.msra.mxu0 0.0
        %2069 = vmatprep.subr.mxu0 0.0
        %2070 = vmatpush1.msra.mxu0 0.0
        %2071 = vmatprep.subr.mxu0 0.0
        %2072 = vmatpush1.msra.mxu0 0.0
        %2073 = vmatprep.subr.mxu0 0.0
        %2074 = vmatpush1.msra.mxu0 0.0
        %2075 = vmatprep.subr.mxu0 0.0
        %2076 = vmatpush1.msra.mxu0 0.0
        %2077 = vmatprep.subr.mxu0 0.0
        %2078 = vmatpush1.msra.mxu0 0.0
        %2079 = vmatprep.subr.mxu0 0.0
        %2080 = vmatpush1.msra.mxu0 0.0
        %2081 = vmatprep.subr.mxu0 0.0
        %2082 = vmatpush1.msra.mxu0 0.0
        %2083 = vmatprep.subr.mxu0 0.0
        %2084 = vmatpush1.msra.mxu0 0.0
        %2085 = vmatprep.subr.mxu0 0.0
        %2086 = vmatpush1.msra.mxu0 0.0
        %2087 = vmatprep.subr.mxu0 0.0
        %2088 = vmatpush1.msra.mxu0 0.0
        %2089 = vmatprep.subr.mxu0 0.0
        %2090 = vmatpush1.msra.mxu0 0.0
        %2091 = vmatprep.subr.mxu0 0.0
        %2092 = vmatpush1.msra.mxu0 0.0
        %2093 = vmatprep.subr.mxu0 0.0
        %2094 = vmatpush1.msra.mxu0 0.0
        %2095 = vmatprep.subr.mxu0 0.0
        %2096 = vmatpush1.msra.mxu0 0.0
        %2097 = vmatprep.subr.mxu0 0.0
        %2098 = vmatpush1.msra.mxu0 0.0
        %2099 = vmatprep.subr.mxu0 0.0
        %2100 = vmatpush1.msra.mxu0 0.0
        %2101 = vmatprep.subr.mxu0 0.0
        %2102 = vmatpush1.msra.mxu0 0.0
        %2103 = vmatprep.mubr.f32.mxu0 0.0
        %2104 = vmatmul.mubr.f32.gmra.mrb[0].mxu0 %v1966
        %v2105 = vpop.f32.mrb[0].mxu0
        %v2106 = vadd.f32 %v1963, %v2105
        %v2107 = vpop.f32.mrb[0].mxu0
        %v2108 = vadd.f32 %v1963, %v2107
        %2109 = vdwg.mxu0
        %2110 = vmatprep.subr.mxu0 %v1899
        %2111 = vmatpush1.msra.mxu0 %v1898
        %2112 = vmatprep.subr.mxu0 %v1907
        %2113 = vmatpush1.msra.mxu0 %v1906
        %2114 = vmatprep.subr.mxu0 %v1915
        %2115 = vmatpush1.msra.mxu0 %v1914
        %2116 = vmatprep.subr.mxu0 %v1923
        %2117 = vmatpush1.msra.mxu0 %v1922
        %2118 = vmatprep.subr.mxu0 %v1931
        %2119 = vmatpush1.msra.mxu0 %v1930
        %2120 = vmatprep.subr.mxu0 %v1939
        %2121 = vmatpush1.msra.mxu0 %v1938
        %2122 = vmatprep.subr.mxu0 %v1947
        %2123 = vmatpush1.msra.mxu0 %v1946
        %2124 = vmatprep.subr.mxu0 %v1955
        %2125 = vmatpush1.msra.mxu0 %v1954
        %2126 = vmatprep.subr.mxu0 0.0
        %2127 = vmatpush1.msra.mxu0 0.0
        %2128 = vmatprep.subr.mxu0 0.0
        %2129 = vmatpush1.msra.mxu0 0.0
        %2130 = vmatprep.subr.mxu0 0.0
        %2131 = vmatpush1.msra.mxu0 0.0
        %2132 = vmatprep.subr.mxu0 0.0
        %2133 = vmatpush1.msra.mxu0 0.0
        %2134 = vmatprep.subr.mxu0 0.0
        %2135 = vmatpush1.msra.mxu0 0.0
        %2136 = vmatprep.subr.mxu0 0.0
        %2137 = vmatpush1.msra.mxu0 0.0
        %2138 = vmatprep.subr.mxu0 0.0
        %2139 = vmatpush1.msra.mxu0 0.0
        %2140 = vmatprep.subr.mxu0 0.0
        %2141 = vmatpush1.msra.mxu0 0.0
        %2142 = vmatprep.subr.mxu0 0.0
        %2143 = vmatpush1.msra.mxu0 0.0
        %2144 = vmatprep.subr.mxu0 0.0
        %2145 = vmatpush1.msra.mxu0 0.0
        %2146 = vmatprep.subr.mxu0 0.0
        %2147 = vmatpush1.msra.mxu0 0.0
        %2148 = vmatprep.subr.mxu0 0.0
        %2149 = vmatpush1.msra.mxu0 0.0
        %2150 = vmatprep.subr.mxu0 0.0
        %2151 = vmatpush1.msra.mxu0 0.0
        %2152 = vmatprep.subr.mxu0 0.0
        %2153 = vmatpush1.msra.mxu0 0.0
        %2154 = vmatprep.subr.mxu0 0.0
        %2155 = vmatpush1.msra.mxu0 0.0
        %2156 = vmatprep.subr.mxu0 0.0
        %2157 = vmatpush1.msra.mxu0 0.0
        %2158 = vmatprep.subr.mxu0 0.0
        %2159 = vmatpush1.msra.mxu0 0.0
        %2160 = vmatprep.subr.mxu0 0.0
        %2161 = vmatpush1.msra.mxu0 0.0
        %2162 = vmatprep.subr.mxu0 0.0
        %2163 = vmatpush1.msra.mxu0 0.0
        %2164 = vmatprep.subr.mxu0 0.0
        %2165 = vmatpush1.msra.mxu0 0.0
        %2166 = vmatprep.subr.mxu0 0.0
        %2167 = vmatpush1.msra.mxu0 0.0
        %2168 = vmatprep.subr.mxu0 0.0
        %2169 = vmatpush1.msra.mxu0 0.0
        %2170 = vmatprep.subr.mxu0 0.0
        %2171 = vmatpush1.msra.mxu0 0.0
        %2172 = vmatprep.subr.mxu0 0.0
        %2173 = vmatpush1.msra.mxu0 0.0
        %2174 = vmatprep.mubr.f32.mxu0 0.0
        %2175 = vmatmul.mubr.f32.gmra.mrb[0].mxu0 %v1966
        %v2176 = vpop.f32.mrb[0].mxu0
        %v2177 = vadd.f32 %v1963, %v2176
        %v2178 = vpop.f32.mrb[0].mxu0
        %v2179 = vadd.f32 %v1963, %v2178
        %2180 = vdwg.mxu0
        %2181 = vmatprep.subr.mxu0 %v1901
        %2182 = vmatpush1.msra.mxu0 %v1900
        %2183 = vmatprep.subr.mxu0 %v1909
        %2184 = vmatpush1.msra.mxu0 %v1908
        %2185 = vmatprep.subr.mxu0 %v1917
        %2186 = vmatpush1.msra.mxu0 %v1916
        %2187 = vmatprep.subr.mxu0 %v1925
        %2188 = vmatpush1.msra.mxu0 %v1924
        %2189 = vmatprep.subr.mxu0 %v1933
        %2190 = vmatpush1.msra.mxu0 %v1932
        %2191 = vmatprep.subr.mxu0 %v1941
        %2192 = vmatpush1.msra.mxu0 %v1940
        %2193 = vmatprep.subr.mxu0 %v1949
        %2194 = vmatpush1.msra.mxu0 %v1948
        %2195 = vmatprep.subr.mxu0 %v1957
        %2196 = vmatpush1.msra.mxu0 %v1956
        %2197 = vmatprep.subr.mxu0 0.0
        %2198 = vmatpush1.msra.mxu0 0.0
        %2199 = vmatprep.subr.mxu0 0.0
        %2200 = vmatpush1.msra.mxu0 0.0
        %2201 = vmatprep.subr.mxu0 0.0
        %2202 = vmatpush1.msra.mxu0 0.0
        %2203 = vmatprep.subr.mxu0 0.0
        %2204 = vmatpush1.msra.mxu0 0.0
        %2205 = vmatprep.subr.mxu0 0.0
        %2206 = vmatpush1.msra.mxu0 0.0
        %2207 = vmatprep.subr.mxu0 0.0
        %2208 = vmatpush1.msra.mxu0 0.0
        %2209 = vmatprep.subr.mxu0 0.0
        %2210 = vmatpush1.msra.mxu0 0.0
        %2211 = vmatprep.subr.mxu0 0.0
        %2212 = vmatpush1.msra.mxu0 0.0
        %2213 = vmatprep.subr.mxu0 0.0
        %2214 = vmatpush1.msra.mxu0 0.0
        %2215 = vmatprep.subr.mxu0 0.0
        %2216 = vmatpush1.msra.mxu0 0.0
        %2217 = vmatprep.subr.mxu0 0.0
        %2218 = vmatpush1.msra.mxu0 0.0
        %2219 = vmatprep.subr.mxu0 0.0
        %2220 = vmatpush1.msra.mxu0 0.0
        %2221 = vmatprep.subr.mxu0 0.0
        %2222 = vmatpush1.msra.mxu0 0.0
        %2223 = vmatprep.subr.mxu0 0.0
        %2224 = vmatpush1.msra.mxu0 0.0
        %2225 = vmatprep.subr.mxu0 0.0
        %2226 = vmatpush1.msra.mxu0 0.0
        %2227 = vmatprep.subr.mxu0 0.0
        %2228 = vmatpush1.msra.mxu0 0.0
        %2229 = vmatprep.subr.mxu0 0.0
        %2230 = vmatpush1.msra.mxu0 0.0
        %2231 = vmatprep.subr.mxu0 0.0
        %2232 = vmatpush1.msra.mxu0 0.0
        %2233 = vmatprep.subr.mxu0 0.0
        %2234 = vmatpush1.msra.mxu0 0.0
        %2235 = vmatprep.subr.mxu0 0.0
        %2236 = vmatpush1.msra.mxu0 0.0
        %2237 = vmatprep.subr.mxu0 0.0
        %2238 = vmatpush1.msra.mxu0 0.0
        %2239 = vmatprep.subr.mxu0 0.0
        %2240 = vmatpush1.msra.mxu0 0.0
        %2241 = vmatprep.subr.mxu0 0.0
        %2242 = vmatpush1.msra.mxu0 0.0
        %2243 = vmatprep.subr.mxu0 0.0
        %2244 = vmatpush1.msra.mxu0 0.0
        %2245 = vmatprep.mubr.f32.mxu0 0.0
        %2246 = vmatmul.mubr.f32.gmra.mrb[0].mxu0 %v1966
        %v2247 = vpop.f32.mrb[0].mxu0
        %v2248 = vadd.f32 %v1963, %v2247
        %v2249 = vpop.f32.mrb[0].mxu0
        %v2250 = vadd.f32 %v1963, %v2249
        %2251 = vdwg.mxu0
        %v2260 = vcombine.low %v2035, %v2037
        %v2261 = vcombine.low %v2106, %v2108
        %v2262 = vcombine.low %v2177, %v2179
        %v2263 = vcombine.low %v2248, %v2250
        %2268 = vst [vmem:[%s275] sm:$0x77] %v2260
        %2269 = vst [vmem:[%s275 + $0x8] sm:$0x77] %v2261
        %2270 = vst [vmem:[%s275 + $0x10] sm:$0x77] %v2262
        %2271 = vst [vmem:[%s275 + $0x18] sm:$0x77] %v2263
        %s2272 = sand.u32 %s161, 1
        %s2273 = scalar_lea.sflag [#allocation4], %s2272
        %s2274 = sand.u32 %s161, 1
        %s2275 = smul.addr %s2274, 32
        %s2276 = scalar_lea.vmem [#allocation7], %s2275
        // Predicated region
        $region53: #{tpu_custom_call.1} parent=43 // pred_check
          %p2277 = pneg %p171
        $region54: #{tpu_custom_call.1} parent=43 // pred_check_branch
          %2279 = sbr.rel (%p2277) target = $region56
        $region55: #{tpu_custom_call.1} parent=43 // pred_region
          %s2280 = smul.u32 8, %s22
          %s2282 = ssub.s32 512, 512
          %2283 = vsyncadd %s2273, %s2282
          %s2284 = smul.addr %s2280, 64
          %s2285 = scalar_lea.hbm %s6, %s2284
          %s2287 = sshll.u32 %s2276, 4
          %s2288 = int_to_ptr.vmem [resolvable:$true] %s2287
          %2290 = dma.vmem_to_hbm [thread:$0]  %s2288, 512, %s2285, %s2273
        $region56: #{tpu_custom_call.1} parent=43 // pred_fallthru
          _
      $region44: #{tpu_custom_call.1} parent=5 // pred_fallthru
        _
      %p2291 = scmp.le.s32.totalorder 2, %s17
      // Predicated region
      $region57: #{tpu_custom_call.1} parent=5 // pred_check
        %p2292 = pneg %p2291
      $region58: #{tpu_custom_call.1} parent=5 // pred_check_branch
        %2294 = sbr.rel (%p2292) target = $region60
      $region59: #{tpu_custom_call.1} parent=5 // pred_region
        %s2295 = ssub.s32 %s17, 2
        // Predicated region
        $region61: #{tpu_custom_call.1} parent=59 // pred_check
          %p2296 = pneg %p177
        $region62: #{tpu_custom_call.1} parent=59 // pred_check_branch
          %2298 = sbr.rel (%p2296) target = $region64
        $region63: #{tpu_custom_call.1} parent=59 // pred_region
          %s2299 = sand.u32 %s162, 1
          %s2300 = scalar_lea.sflag [#allocation4], %s2299
          %s2301 = sand.u32 %s162, 1
          %s2302 = smul.addr %s2301, 32
          %s2303 = scalar_lea.vmem [#allocation7], %s2302
          %2304 = dma.done %s2300, 512
        $region64: #{tpu_custom_call.1} parent=59 // pred_fallthru
          _
      $region60: #{tpu_custom_call.1} parent=5 // pred_fallthru
        _
    $region6: #{tpu_custom_call.1} parent=1 // loop_footer
      %s21 = sadd.s32 1, %s17
    $region7: #{tpu_custom_call.1} parent=1 // loop_footer_branch
      %16 = sbr.rel target = $region3
    $region8: #{tpu_custom_call.1} parent=1 // loop_exit
      _
    %2305 = vsyncpa [#allocation3], 1
    %s2306 = scalar_lea.sflag [#allocation3], 1
    %2307 = vsyncpa %s2306, 1
    %2308 = vsyncpa [#allocation6], 1
    %2309 = vsyncpa [#allocation4], 1
    %s2310 = scalar_lea.sflag [#allocation4], 1
    %2311 = vsyncpa %s2310, 1

</llo_original>
